<compile_context>
chip_gen: v7x
topology: tpu7x:2x2x1
jax: 0.10.0
libtpu: 0.0.40
codegen_flags: <defaults>
</compile_context>

<pallas_src>
import functools

import jax
import jax.numpy as jnp
import numpy as np
from jax.experimental import pallas as pl
from jax.experimental.pallas import tpu as pltpu

KSIZE = 7
PAD = (KSIZE - 1) // 2


def _round_up(v, m):
    return (v + m - 1) // m * m


def _spatial_gate_kernel(w_ref, bn_ref, x_ref, o_ref, pad_ref, *, C, H, W):
    """Fused pool + 7x7 conv + BN + sigmoid + gate for one image.

    w_ref   : SMEM (2*7*7,) f32   conv weight, OIHW flattened (c*49 + ky*7 + kx)
    bn_ref  : SMEM (2,)     f32   folded BatchNorm (scale, shift)
    x_ref   : VMEM (1, C, H, W)   input block (exact H, W -- no padding)
    o_ref   : VMEM (1, C, H, W)   output block
    pad_ref : VMEM (2, Hs, Ws) f32 scratch; pooled data lives in
              rows [PAD, PAD+H) x cols [PAD, PAD+W); the surrounding halo is
              kept zero and provides the conv's SAME padding.
    """
    f32 = jnp.float32
    _, Hs, Ws = pad_ref.shape

    # ---- zero ONLY the halo the 7x7 SAME conv actually reads ---------------
    # (Cheap masked stores every step; megacore-safe, unlike a program_id==0
    #  one-shot init.  The interior is fully overwritten below.)
    pad_ref[:, 0:PAD, :] = jnp.zeros((2, PAD, Ws), f32)                  # top
    pad_ref[:, PAD + H:Hs, :] = jnp.zeros((2, Hs - PAD - H, Ws), f32)    # bottom
    pad_ref[:, :, 0:PAD] = jnp.zeros((2, Hs, PAD), f32)                  # left
    pad_ref[:, :, PAD + W:W + 2 * PAD] = jnp.zeros((2, Hs, PAD), f32)    # right

    # ---- channel max & mean in ONE pass over C, slab by slab ---------------
    # (No full f32 copy of the block; only two (H, W) f32 accumulators live.)
    x0 = x_ref[0, 0].astype(f32)

    def pool_body(c, carry):
        mx, sm = carry
        xc = x_ref[0, c].astype(f32)
        return jnp.maximum(mx, xc), sm + xc

    mx, sm = jax.lax.fori_loop(1, C, pool_body, (x0, x0))
    pad_ref[0, PAD:PAD + H, PAD:PAD + W] = mx
    pad_ref[1, PAD:PAD + H, PAD:PAD + W] = sm * (1.0 / C)

    # ---- 7x7 SAME conv (2 -> 1), unrolled taps on the VPU -------------------
    # K=98, N=1 is a terrible MXU shape, so stay on the VPU.  Lane shifts are
    # hoisted out of the ky loop: one column-shifted (Hs, W) view per (c, kx)
    # pair (14 total) instead of 84 per-band shifts.
    w = [w_ref[i] for i in range(2 * KSIZE * KSIZE)]   # hoist 98 SMEM reads

    acc = jnp.zeros((H, W), f32)
    for c in range(2):
        plane = pad_ref[c]                             # (Hs, Ws) f32
        for kx in range(KSIZE):
            colwin = plane[:, kx:kx + W]               # (Hs, W) lane-shifted view
            for ky in range(KSIZE):
                wv = w[c * KSIZE * KSIZE + ky * KSIZE + kx]
                acc = acc + wv * colwin[ky:ky + H, :]
    # TODO(synk): strip-mine acc over H (and tile the grid over H with a 3-row
    # halo + over C for the gating loop) for large planes, so acc/colwin stay
    # inside the 64-vreg file and a block fits v7x's 64 MiB VMEM / 2 TCs.

    # ---- folded BatchNorm + sigmoid, gate each channel slab ----------------
    # Gate cast once to x's dtype: bf16 inputs are multiplied natively (packed
    # bf16 VALU on v6e/v7x); f32 inputs keep the exact f32 path (also what a
    # v5e, which has no bf16 VALU, prefers for f32 models).
    gate = jax.nn.sigmoid(acc * bn_ref[0] + bn_ref[1]).astype(o_ref.dtype)

    def gate_body(c, carry):
        o_ref[0, c] = x_ref[0, c] * gate
        return carry

    jax.lax.fori_loop(0, C, gate_body, 0)


def spatial_gate(x, conv_w,
                 bn_gamma=1.0, bn_beta=0.0, bn_mean=0.0, bn_var=1.0, eps=1e-5):
    """SpatialGate forward.  x: (N, C, H, W), conv_w: (1, 2, 7, 7)."""
    N, C, H, W = x.shape
    Hs = _round_up(H + 2 * PAD, 8)       # scratch rows  (sublane aligned)
    Ws = _round_up(W + 2 * PAD, 128)     # scratch lanes (lane aligned)

    # Fold inference-mode BatchNorm(1) into (scale, shift); passed via SMEM so
    # traced / updated BN stats never force a recompile.
    bn_scale = jnp.asarray(bn_gamma, jnp.float32).reshape(()) * jax.lax.rsqrt(
        jnp.asarray(bn_var, jnp.float32).reshape(()) + jnp.float32(eps))
    bn_shift = (jnp.asarray(bn_beta, jnp.float32).reshape(())
                - jnp.asarray(bn_mean, jnp.float32).reshape(()) * bn_scale)
    bn_params = jnp.stack([bn_scale, bn_shift])            # (2,) f32

    w_flat = jnp.asarray(conv_w, jnp.float32).reshape(-1)  # (98,)

    # Honest VMEM budget: double-buffered in/out blocks + scratch + the f32
    # temporaries the kernel actually holds (pool accumulators, acc, gate, one
    # full plane + one column-shifted view), with headroom, capped per chip.
    itemsize = jnp.dtype(x.dtype).itemsize
    block_bytes = C * H * W * itemsize
    temp_bytes = (2 * Hs * Ws + 2 * Hs * W + 6 * H * W) * 4
    needed = 4 * block_bytes + 2 * Hs * Ws * 4 + temp_bytes + (8 << 20)
    try:  # ~80% of physical VMEM (leave compiler-internal headroom); 128 MiB
          # on v5e/v6e, 64 MiB on v7x -> caps at ~102 / ~51 MiB respectively.
        cap = int(pltpu.get_tpu_info().vmem_capacity_bytes) * 4 // 5
    except Exception:  # unknown chip -> conservative cap that fits every gen
        cap = 48 << 20
    vmem_limit = int(min(max(needed, 16 << 20), cap))

    cost = pl.CostEstimate(
        flops=int(N * H * W * (4 * KSIZE * KSIZE + 3 * C + 4)),
        transcendentals=int(N * H * W),
        bytes_accessed=int(2 * N * C * H * W * itemsize
                           + (2 * KSIZE * KSIZE + 2) * 4),
    )

    kernel = functools.partial(_spatial_gate_kernel, C=C, H=H, W=W)

    # TODO(synk): when a whole-image block approaches vmem_limit/4 (large C*H*W),
    # tile the grid over H with a +/-3-row halo so the kernel bounds VMEM, deepens
    # the pipeline, and feeds both v7x TensorCores even at small N.
    return pl.pallas_call(
        kernel,
        out_shape=jax.ShapeDtypeStruct((N, C, H, W), x.dtype),
        grid=(N,),
        in_specs=[
            pl.BlockSpec(memory_space=pltpu.MemorySpace.SMEM),      # conv weight
            pl.BlockSpec(memory_space=pltpu.MemorySpace.SMEM),      # BN (scale, shift)
            pl.BlockSpec((1, C, H, W), lambda n: (n, 0, 0, 0)),     # x
        ],
        out_specs=pl.BlockSpec((1, C, H, W), lambda n: (n, 0, 0, 0)),
        scratch_shapes=[pltpu.VMEM((2, Hs, Ws), jnp.float32)],
        compiler_params=pltpu.CompilerParams(
            dimension_semantics=("parallel",),
            vmem_limit_bytes=vmem_limit),
        cost_estimate=cost,
    )(w_flat, bn_params, x)


# ---------------------------------------------------------------------------
# Pure-JAX reference for validation
# ---------------------------------------------------------------------------
def spatial_gate_ref(x, conv_w,
                     bn_gamma=1.0, bn_beta=0.0, bn_mean=0.0, bn_var=1.0, eps=1e-5):
    pooled = jnp.concatenate(
        [jnp.max(x, axis=1, keepdims=True), jnp.mean(x, axis=1, keepdims=True)],
        axis=1)
    conv = jax.lax.conv_general_dilated(
        pooled, conv_w, window_strides=(1, 1), padding="SAME",
        dimension_numbers=("NCHW", "OIHW", "NCHW"))
    bn = (conv - bn_mean) * (bn_gamma / jnp.sqrt(bn_var + eps)) + bn_beta
    return x * jax.nn.sigmoid(bn)


if __name__ == "__main__":
    key = jax.random.PRNGKey(0)
    k_x, k_w, k_x2 = jax.random.split(key, 3)

    # Conv2d(2, 1, 7) weight, OIHW.
    conv_w = (jax.random.normal(k_w, (1, 2, KSIZE, KSIZE), dtype=jnp.float32)
              * (1.0 / np.sqrt(2 * KSIZE * KSIZE)))
    # Non-trivial folded BatchNorm stats so the BN fold is actually validated.
    gamma, beta, mean, var = 1.3, -0.2, 0.05, 0.8

    # Case 1: canonical small shape.
    N, C, H, W = 2, 4, 16, 16
    x = jax.random.normal(k_x, (N, C, H, W), dtype=jnp.float32)
    out = jax.block_until_ready(spatial_gate(x, conv_w, gamma, beta, mean, var))
    ref = spatial_gate_ref(x, conv_w, gamma, beta, mean, var)
    np.testing.assert_allclose(np.asarray(out), np.asarray(ref),
                               rtol=1e-5, atol=1e-5)

    # Case 2: unaligned H/W and odd C (no wrapper-side padding anymore).
    x2 = jax.random.normal(k_x2, (1, 5, 14, 20), dtype=jnp.float32)
    out2 = jax.block_until_ready(spatial_gate(x2, conv_w))
    ref2 = spatial_gate_ref(x2, conv_w)
    np.testing.assert_allclose(np.asarray(out2), np.asarray(ref2),
                               rtol=1e-5, atol=1e-5)

    print("KERNEL_OK")
</pallas_src>

<mosaic_0001>
module attributes {stable_mosaic.version = 11 : i64} {
  func.func @_spatial_gate_kernel(%arg0: i32, %arg1: memref<98xf32, #tpu.memory_space<smem>>, %arg2: memref<2xf32, #tpu.memory_space<smem>>, %arg3: memref<1x4x16x16xf32, #tpu.memory_space<vmem>>, %arg4: memref<1x4x16x16xf32, #tpu.memory_space<vmem>>, %arg5: memref<2x24x128xf32, #tpu.memory_space<vmem>>) attributes {dimension_semantics = [#tpu.dimension_semantics<parallel>], iteration_bounds = array<i64: 2>, scalar_prefetch = 0 : i64, scratch_operands = 1 : i64, tpu.core_type = #tpu.core_type<tc>, window_params = [{transform_indices = @transform_0, window_bounds = array<i64: 98>}, {transform_indices = @transform_1, window_bounds = array<i64: 2>}, {transform_indices = @transform_2, window_bounds = array<i64: 1, 4, 16, 16>}, {transform_indices = @transform_3, window_bounds = array<i64: 1, 4, 16, 16>}]} {
    %cst = arith.constant 0.000000e+00 : f32
    %0 = vector.broadcast %cst : f32 to vector<2x3x128xf32>
    %c0 = arith.constant 0 : index
    %c0_0 = arith.constant 0 : index
    %c0_1 = arith.constant 0 : index
    %1 = vector.load %arg5[%c0, %c0_0, %c0_1] : memref<2x24x128xf32, #tpu.memory_space<vmem>>, vector<2x3x128xf32>
    tpu.vector_store %arg5[%c0, %c0_0, %c0_1], %0 {strides = array<i32>} : memref<2x24x128xf32, #tpu.memory_space<vmem>>, vector<2x3x128xf32>,
    %cst_2 = arith.constant 0.000000e+00 : f32
    %2 = vector.broadcast %cst_2 : f32 to vector<2x5x128xf32>
    %c0_3 = arith.constant 0 : index
    %c19 = arith.constant 19 : index
    %c0_4 = arith.constant 0 : index
    %3 = vector.load %arg5[%c0_3, %c19, %c0_4] : memref<2x24x128xf32, #tpu.memory_space<vmem>>, vector<2x5x128xf32>
    tpu.vector_store %arg5[%c0_3, %c19, %c0_4], %2 {strides = array<i32>} : memref<2x24x128xf32, #tpu.memory_space<vmem>>, vector<2x5x128xf32>,
    %cst_5 = arith.constant 0.000000e+00 : f32
    %4 = vector.broadcast %cst_5 : f32 to vector<2x24x3xf32>
    %c0_6 = arith.constant 0 : index
    %c0_7 = arith.constant 0 : index
    %c0_8 = arith.constant 0 : index
    %5 = vector.load %arg5[%c0_6, %c0_7, %c0_8] : memref<2x24x128xf32, #tpu.memory_space<vmem>>, vector<2x24x3xf32>
    tpu.vector_store %arg5[%c0_6, %c0_7, %c0_8], %4 {strides = array<i32>} : memref<2x24x128xf32, #tpu.memory_space<vmem>>, vector<2x24x3xf32>,
    %cst_9 = arith.constant 0.000000e+00 : f32
    %6 = vector.broadcast %cst_9 : f32 to vector<2x24x3xf32>
    %c0_10 = arith.constant 0 : index
    %c0_11 = arith.constant 0 : index
    %c19_12 = arith.constant 19 : index
    %7 = vector.load %arg5[%c0_10, %c0_11, %c19_12] : memref<2x24x128xf32, #tpu.memory_space<vmem>>, vector<2x24x3xf32>
    tpu.vector_store %arg5[%c0_10, %c0_11, %c19_12], %6 {strides = array<i32>} : memref<2x24x128xf32, #tpu.memory_space<vmem>>, vector<2x24x3xf32>,
    %c0_13 = arith.constant 0 : index
    %c0_14 = arith.constant 0 : index
    %c0_15 = arith.constant 0 : index
    %c0_16 = arith.constant 0 : index
    %8 = vector.load %arg3[%c0_13, %c0_14, %c0_15, %c0_16] : memref<1x4x16x16xf32, #tpu.memory_space<vmem>>, vector<1x1x16x16xf32>
    %9 = vector.shape_cast %8 : vector<1x1x16x16xf32> to vector<16x16xf32>
    %c1_i32 = arith.constant 1 : i32
    %c3_i32 = arith.constant 3 : i32
    %10 = arith.addi %c1_i32, %c3_i32 : i32
    %c1_i32_17 = arith.constant 1 : i32
    %11:2 = scf.for %arg6 = %c1_i32 to %10 step %c1_i32_17 iter_args(%arg7 = %9, %arg8 = %9) -> (vector<16x16xf32>, vector<16x16xf32>)  : i32 {
      %c0_40 = arith.constant 0 : index
      %541 = arith.index_cast %arg6 : i32 to index
      %c0_41 = arith.constant 0 : index
      %c0_42 = arith.constant 0 : index
      %542 = vector.load %arg3[%c0_40, %541, %c0_41, %c0_42] : memref<1x4x16x16xf32, #tpu.memory_space<vmem>>, vector<1x1x16x16xf32>
      %543 = vector.shape_cast %542 : vector<1x1x16x16xf32> to vector<16x16xf32>
      %544 = arith.maximumf %arg7, %543 : vector<16x16xf32>
      %545 = arith.addf %arg8, %543 : vector<16x16xf32>
      scf.yield %544, %545 : vector<16x16xf32>, vector<16x16xf32>
    }
    %c3_i32_18 = arith.constant 3 : i32
    %c0_19 = arith.constant 0 : index
    %c3 = arith.constant 3 : index
    %c3_20 = arith.constant 3 : index
    %12 = vector.load %arg5[%c0_19, %c3, %c3_20] : memref<2x24x128xf32, #tpu.memory_space<vmem>>, vector<1x16x16xf32>
    %13 = vector.shape_cast %12 : vector<1x16x16xf32> to vector<16x16xf32>
    %14 = vector.shape_cast %11#0 : vector<16x16xf32> to vector<1x16x16xf32>
    tpu.vector_store %arg5[%c0_19, %c3, %c3_20], %14 {strides = array<i32>} : memref<2x24x128xf32, #tpu.memory_space<vmem>>, vector<1x16x16xf32>,
    %cst_21 = arith.constant 2.500000e-01 : f32
    %15 = vector.broadcast %cst_21 : f32 to vector<16x16xf32>
    %16 = arith.mulf %11#1, %15 : vector<16x16xf32>
    %c1 = arith.constant 1 : index
    %c3_22 = arith.constant 3 : index
    %c3_23 = arith.constant 3 : index
    %17 = vector.load %arg5[%c1, %c3_22, %c3_23] : memref<2x24x128xf32, #tpu.memory_space<vmem>>, vector<1x16x16xf32>
    %18 = vector.shape_cast %17 : vector<1x16x16xf32> to vector<16x16xf32>
    %19 = vector.shape_cast %16 : vector<16x16xf32> to vector<1x16x16xf32>
    tpu.vector_store %arg5[%c1, %c3_22, %c3_23], %19 {strides = array<i32>} : memref<2x24x128xf32, #tpu.memory_space<vmem>>, vector<1x16x16xf32>,
    %c0_24 = arith.constant 0 : index
    %20 = memref.load %arg1[%c0_24] : memref<98xf32, #tpu.memory_space<smem>>
    %c1_25 = arith.constant 1 : index
    %21 = memref.load %arg1[%c1_25] : memref<98xf32, #tpu.memory_space<smem>>
    %c2 = arith.constant 2 : index
    %22 = memref.load %arg1[%c2] : memref<98xf32, #tpu.memory_space<smem>>
    %c3_26 = arith.constant 3 : index
    %23 = memref.load %arg1[%c3_26] : memref<98xf32, #tpu.memory_space<smem>>
    %c4 = arith.constant 4 : index
    %24 = memref.load %arg1[%c4] : memref<98xf32, #tpu.memory_space<smem>>
    %c5 = arith.constant 5 : index
    %25 = memref.load %arg1[%c5] : memref<98xf32, #tpu.memory_space<smem>>
    %c6 = arith.constant 6 : index
    %26 = memref.load %arg1[%c6] : memref<98xf32, #tpu.memory_space<smem>>
    %c7 = arith.constant 7 : index
    %27 = memref.load %arg1[%c7] : memref<98xf32, #tpu.memory_space<smem>>
    %c8 = arith.constant 8 : index
    %28 = memref.load %arg1[%c8] : memref<98xf32, #tpu.memory_space<smem>>
    %c9 = arith.constant 9 : index
    %29 = memref.load %arg1[%c9] : memref<98xf32, #tpu.memory_space<smem>>
    %c10 = arith.constant 10 : index
    %30 = memref.load %arg1[%c10] : memref<98xf32, #tpu.memory_space<smem>>
    %c11 = arith.constant 11 : index
    %31 = memref.load %arg1[%c11] : memref<98xf32, #tpu.memory_space<smem>>
    %c12 = arith.constant 12 : index
    %32 = memref.load %arg1[%c12] : memref<98xf32, #tpu.memory_space<smem>>
    %c13 = arith.constant 13 : index
    %33 = memref.load %arg1[%c13] : memref<98xf32, #tpu.memory_space<smem>>
    %c14 = arith.constant 14 : index
    %34 = memref.load %arg1[%c14] : memref<98xf32, #tpu.memory_space<smem>>
    %c15 = arith.constant 15 : index
    %35 = memref.load %arg1[%c15] : memref<98xf32, #tpu.memory_space<smem>>
    %c16 = arith.constant 16 : index
    %36 = memref.load %arg1[%c16] : memref<98xf32, #tpu.memory_space<smem>>
    %c17 = arith.constant 17 : index
    %37 = memref.load %arg1[%c17] : memref<98xf32, #tpu.memory_space<smem>>
    %c18 = arith.constant 18 : index
    %38 = memref.load %arg1[%c18] : memref<98xf32, #tpu.memory_space<smem>>
    %c19_27 = arith.constant 19 : index
    %39 = memref.load %arg1[%c19_27] : memref<98xf32, #tpu.memory_space<smem>>
    %c20 = arith.constant 20 : index
    %40 = memref.load %arg1[%c20] : memref<98xf32, #tpu.memory_space<smem>>
    %c21 = arith.constant 21 : index
    %41 = memref.load %arg1[%c21] : memref<98xf32, #tpu.memory_space<smem>>
    %c22 = arith.constant 22 : index
    %42 = memref.load %arg1[%c22] : memref<98xf32, #tpu.memory_space<smem>>
    %c23 = arith.constant 23 : index
    %43 = memref.load %arg1[%c23] : memref<98xf32, #tpu.memory_space<smem>>
    %c24 = arith.constant 24 : index
    %44 = memref.load %arg1[%c24] : memref<98xf32, #tpu.memory_space<smem>>
    %c25 = arith.constant 25 : index
    %45 = memref.load %arg1[%c25] : memref<98xf32, #tpu.memory_space<smem>>
    %c26 = arith.constant 26 : index
    %46 = memref.load %arg1[%c26] : memref<98xf32, #tpu.memory_space<smem>>
    %c27 = arith.constant 27 : index
    %47 = memref.load %arg1[%c27] : memref<98xf32, #tpu.memory_space<smem>>
    %c28 = arith.constant 28 : index
    %48 = memref.load %arg1[%c28] : memref<98xf32, #tpu.memory_space<smem>>
    %c29 = arith.constant 29 : index
    %49 = memref.load %arg1[%c29] : memref<98xf32, #tpu.memory_space<smem>>
    %c30 = arith.constant 30 : index
    %50 = memref.load %arg1[%c30] : memref<98xf32, #tpu.memory_space<smem>>
    %c31 = arith.constant 31 : index
    %51 = memref.load %arg1[%c31] : memref<98xf32, #tpu.memory_space<smem>>
    %c32 = arith.constant 32 : index
    %52 = memref.load %arg1[%c32] : memref<98xf32, #tpu.memory_space<smem>>
    %c33 = arith.constant 33 : index
    %53 = memref.load %arg1[%c33] : memref<98xf32, #tpu.memory_space<smem>>
    %c34 = arith.constant 34 : index
    %54 = memref.load %arg1[%c34] : memref<98xf32, #tpu.memory_space<smem>>
    %c35 = arith.constant 35 : index
    %55 = memref.load %arg1[%c35] : memref<98xf32, #tpu.memory_space<smem>>
    %c36 = arith.constant 36 : index
    %56 = memref.load %arg1[%c36] : memref<98xf32, #tpu.memory_space<smem>>
    %c37 = arith.constant 37 : index
    %57 = memref.load %arg1[%c37] : memref<98xf32, #tpu.memory_space<smem>>
    %c38 = arith.constant 38 : index
    %58 = memref.load %arg1[%c38] : memref<98xf32, #tpu.memory_space<smem>>
    %c39 = arith.constant 39 : index
    %59 = memref.load %arg1[%c39] : memref<98xf32, #tpu.memory_space<smem>>
    %c40 = arith.constant 40 : index
    %60 = memref.load %arg1[%c40] : memref<98xf32, #tpu.memory_space<smem>>
    %c41 = arith.constant 41 : index
    %61 = memref.load %arg1[%c41] : memref<98xf32, #tpu.memory_space<smem>>
    %c42 = arith.constant 42 : index
    %62 = memref.load %arg1[%c42] : memref<98xf32, #tpu.memory_space<smem>>
    %c43 = arith.constant 43 : index
    %63 = memref.load %arg1[%c43] : memref<98xf32, #tpu.memory_space<smem>>
    %c44 = arith.constant 44 : index
    %64 = memref.load %arg1[%c44] : memref<98xf32, #tpu.memory_space<smem>>
    %c45 = arith.constant 45 : index
    %65 = memref.load %arg1[%c45] : memref<98xf32, #tpu.memory_space<smem>>
    %c46 = arith.constant 46 : index
    %66 = memref.load %arg1[%c46] : memref<98xf32, #tpu.memory_space<smem>>
    %c47 = arith.constant 47 : index
    %67 = memref.load %arg1[%c47] : memref<98xf32, #tpu.memory_space<smem>>
    %c48 = arith.constant 48 : index
    %68 = memref.load %arg1[%c48] : memref<98xf32, #tpu.memory_space<smem>>
    %c49 = arith.constant 49 : index
    %69 = memref.load %arg1[%c49] : memref<98xf32, #tpu.memory_space<smem>>
    %c50 = arith.constant 50 : index
    %70 = memref.load %arg1[%c50] : memref<98xf32, #tpu.memory_space<smem>>
    %c51 = arith.constant 51 : index
    %71 = memref.load %arg1[%c51] : memref<98xf32, #tpu.memory_space<smem>>
    %c52 = arith.constant 52 : index
    %72 = memref.load %arg1[%c52] : memref<98xf32, #tpu.memory_space<smem>>
    %c53 = arith.constant 53 : index
    %73 = memref.load %arg1[%c53] : memref<98xf32, #tpu.memory_space<smem>>
    %c54 = arith.constant 54 : index
    %74 = memref.load %arg1[%c54] : memref<98xf32, #tpu.memory_space<smem>>
    %c55 = arith.constant 55 : index
    %75 = memref.load %arg1[%c55] : memref<98xf32, #tpu.memory_space<smem>>
    %c56 = arith.constant 56 : index
    %76 = memref.load %arg1[%c56] : memref<98xf32, #tpu.memory_space<smem>>
    %c57 = arith.constant 57 : index
    %77 = memref.load %arg1[%c57] : memref<98xf32, #tpu.memory_space<smem>>
    %c58 = arith.constant 58 : index
    %78 = memref.load %arg1[%c58] : memref<98xf32, #tpu.memory_space<smem>>
    %c59 = arith.constant 59 : index
    %79 = memref.load %arg1[%c59] : memref<98xf32, #tpu.memory_space<smem>>
    %c60 = arith.constant 60 : index
    %80 = memref.load %arg1[%c60] : memref<98xf32, #tpu.memory_space<smem>>
    %c61 = arith.constant 61 : index
    %81 = memref.load %arg1[%c61] : memref<98xf32, #tpu.memory_space<smem>>
    %c62 = arith.constant 62 : index
    %82 = memref.load %arg1[%c62] : memref<98xf32, #tpu.memory_space<smem>>
    %c63 = arith.constant 63 : index
    %83 = memref.load %arg1[%c63] : memref<98xf32, #tpu.memory_space<smem>>
    %c64 = arith.constant 64 : index
    %84 = memref.load %arg1[%c64] : memref<98xf32, #tpu.memory_space<smem>>
    %c65 = arith.constant 65 : index
    %85 = memref.load %arg1[%c65] : memref<98xf32, #tpu.memory_space<smem>>
    %c66 = arith.constant 66 : index
    %86 = memref.load %arg1[%c66] : memref<98xf32, #tpu.memory_space<smem>>
    %c67 = arith.constant 67 : index
    %87 = memref.load %arg1[%c67] : memref<98xf32, #tpu.memory_space<smem>>
    %c68 = arith.constant 68 : index
    %88 = memref.load %arg1[%c68] : memref<98xf32, #tpu.memory_space<smem>>
    %c69 = arith.constant 69 : index
    %89 = memref.load %arg1[%c69] : memref<98xf32, #tpu.memory_space<smem>>
    %c70 = arith.constant 70 : index
    %90 = memref.load %arg1[%c70] : memref<98xf32, #tpu.memory_space<smem>>
    %c71 = arith.constant 71 : index
    %91 = memref.load %arg1[%c71] : memref<98xf32, #tpu.memory_space<smem>>
    %c72 = arith.constant 72 : index
    %92 = memref.load %arg1[%c72] : memref<98xf32, #tpu.memory_space<smem>>
    %c73 = arith.constant 73 : index
    %93 = memref.load %arg1[%c73] : memref<98xf32, #tpu.memory_space<smem>>
    %c74 = arith.constant 74 : index
    %94 = memref.load %arg1[%c74] : memref<98xf32, #tpu.memory_space<smem>>
    %c75 = arith.constant 75 : index
    %95 = memref.load %arg1[%c75] : memref<98xf32, #tpu.memory_space<smem>>
    %c76 = arith.constant 76 : index
    %96 = memref.load %arg1[%c76] : memref<98xf32, #tpu.memory_space<smem>>
    %c77 = arith.constant 77 : index
    %97 = memref.load %arg1[%c77] : memref<98xf32, #tpu.memory_space<smem>>
    %c78 = arith.constant 78 : index
    %98 = memref.load %arg1[%c78] : memref<98xf32, #tpu.memory_space<smem>>
    %c79 = arith.constant 79 : index
    %99 = memref.load %arg1[%c79] : memref<98xf32, #tpu.memory_space<smem>>
    %c80 = arith.constant 80 : index
    %100 = memref.load %arg1[%c80] : memref<98xf32, #tpu.memory_space<smem>>
    %c81 = arith.constant 81 : index
    %101 = memref.load %arg1[%c81] : memref<98xf32, #tpu.memory_space<smem>>
    %c82 = arith.constant 82 : index
    %102 = memref.load %arg1[%c82] : memref<98xf32, #tpu.memory_space<smem>>
    %c83 = arith.constant 83 : index
    %103 = memref.load %arg1[%c83] : memref<98xf32, #tpu.memory_space<smem>>
    %c84 = arith.constant 84 : index
    %104 = memref.load %arg1[%c84] : memref<98xf32, #tpu.memory_space<smem>>
    %c85 = arith.constant 85 : index
    %105 = memref.load %arg1[%c85] : memref<98xf32, #tpu.memory_space<smem>>
    %c86 = arith.constant 86 : index
    %106 = memref.load %arg1[%c86] : memref<98xf32, #tpu.memory_space<smem>>
    %c87 = arith.constant 87 : index
    %107 = memref.load %arg1[%c87] : memref<98xf32, #tpu.memory_space<smem>>
    %c88 = arith.constant 88 : index
    %108 = memref.load %arg1[%c88] : memref<98xf32, #tpu.memory_space<smem>>
    %c89 = arith.constant 89 : index
    %109 = memref.load %arg1[%c89] : memref<98xf32, #tpu.memory_space<smem>>
    %c90 = arith.constant 90 : index
    %110 = memref.load %arg1[%c90] : memref<98xf32, #tpu.memory_space<smem>>
    %c91 = arith.constant 91 : index
    %111 = memref.load %arg1[%c91] : memref<98xf32, #tpu.memory_space<smem>>
    %c92 = arith.constant 92 : index
    %112 = memref.load %arg1[%c92] : memref<98xf32, #tpu.memory_space<smem>>
    %c93 = arith.constant 93 : index
    %113 = memref.load %arg1[%c93] : memref<98xf32, #tpu.memory_space<smem>>
    %c94 = arith.constant 94 : index
    %114 = memref.load %arg1[%c94] : memref<98xf32, #tpu.memory_space<smem>>
    %c95 = arith.constant 95 : index
    %115 = memref.load %arg1[%c95] : memref<98xf32, #tpu.memory_space<smem>>
    %c96 = arith.constant 96 : index
    %116 = memref.load %arg1[%c96] : memref<98xf32, #tpu.memory_space<smem>>
    %c97 = arith.constant 97 : index
    %117 = memref.load %arg1[%c97] : memref<98xf32, #tpu.memory_space<smem>>
    %cst_28 = arith.constant 0.000000e+00 : f32
    %118 = vector.broadcast %cst_28 : f32 to vector<16x16xf32>
    %c0_29 = arith.constant 0 : index
    %c0_30 = arith.constant 0 : index
    %c0_31 = arith.constant 0 : index
    %119 = vector.load %arg5[%c0_29, %c0_30, %c0_31] : memref<2x24x128xf32, #tpu.memory_space<vmem>>, vector<1x24x128xf32>
    %120 = vector.shape_cast %119 : vector<1x24x128xf32> to vector<24x128xf32>
    %121 = vector.extract_strided_slice %120 {offsets = [0, 0], sizes = [24, 16], strides = [1, 1]} : vector<24x128xf32> to vector<24x16xf32>
    %122 = vector.extract_strided_slice %121 {offsets = [0, 0], sizes = [16, 16], strides = [1, 1]} : vector<24x16xf32> to vector<16x16xf32>
    %123 = vector.broadcast %20 : f32 to vector<16x16xf32>
    %124 = arith.mulf %123, %122 : vector<16x16xf32>
    %125 = arith.addf %118, %124 : vector<16x16xf32>
    %126 = vector.extract_strided_slice %121 {offsets = [1, 0], sizes = [16, 16], strides = [1, 1]} : vector<24x16xf32> to vector<16x16xf32>
    %127 = vector.broadcast %27 : f32 to vector<16x16xf32>
    %128 = arith.mulf %127, %126 : vector<16x16xf32>
    %129 = arith.addf %125, %128 : vector<16x16xf32>
    %130 = vector.extract_strided_slice %121 {offsets = [2, 0], sizes = [16, 16], strides = [1, 1]} : vector<24x16xf32> to vector<16x16xf32>
    %131 = vector.broadcast %34 : f32 to vector<16x16xf32>
    %132 = arith.mulf %131, %130 : vector<16x16xf32>
    %133 = arith.addf %129, %132 : vector<16x16xf32>
    %134 = vector.extract_strided_slice %121 {offsets = [3, 0], sizes = [16, 16], strides = [1, 1]} : vector<24x16xf32> to vector<16x16xf32>
    %135 = vector.broadcast %41 : f32 to vector<16x16xf32>
    %136 = arith.mulf %135, %134 : vector<16x16xf32>
    %137 = arith.addf %133, %136 : vector<16x16xf32>
    %138 = vector.extract_strided_slice %121 {offsets = [4, 0], sizes = [16, 16], strides = [1, 1]} : vector<24x16xf32> to vector<16x16xf32>
    %139 = vector.broadcast %48 : f32 to vector<16x16xf32>
    %140 = arith.mulf %139, %138 : vector<16x16xf32>
    %141 = arith.addf %137, %140 : vector<16x16xf32>
    %142 = vector.extract_strided_slice %121 {offsets = [5, 0], sizes = [16, 16], strides = [1, 1]} : vector<24x16xf32> to vector<16x16xf32>
    %143 = vector.broadcast %55 : f32 to vector<16x16xf32>
    %144 = arith.mulf %143, %142 : vector<16x16xf32>
    %145 = arith.addf %141, %144 : vector<16x16xf32>
    %146 = vector.extract_strided_slice %121 {offsets = [6, 0], sizes = [16, 16], strides = [1, 1]} : vector<24x16xf32> to vector<16x16xf32>
    %147 = vector.broadcast %62 : f32 to vector<16x16xf32>
    %148 = arith.mulf %147, %146 : vector<16x16xf32>
    %149 = arith.addf %145, %148 : vector<16x16xf32>
    %150 = vector.extract_strided_slice %120 {offsets = [0, 1], sizes = [24, 16], strides = [1, 1]} : vector<24x128xf32> to vector<24x16xf32>
    %151 = vector.extract_strided_slice %150 {offsets = [0, 0], sizes = [16, 16], strides = [1, 1]} : vector<24x16xf32> to vector<16x16xf32>
    %152 = vector.broadcast %21 : f32 to vector<16x16xf32>
    %153 = arith.mulf %152, %151 : vector<16x16xf32>
    %154 = arith.addf %149, %153 : vector<16x16xf32>
    %155 = vector.extract_strided_slice %150 {offsets = [1, 0], sizes = [16, 16], strides = [1, 1]} : vector<24x16xf32> to vector<16x16xf32>
    %156 = vector.broadcast %28 : f32 to vector<16x16xf32>
    %157 = arith.mulf %156, %155 : vector<16x16xf32>
    %158 = arith.addf %154, %157 : vector<16x16xf32>
    %159 = vector.extract_strided_slice %150 {offsets = [2, 0], sizes = [16, 16], strides = [1, 1]} : vector<24x16xf32> to vector<16x16xf32>
    %160 = vector.broadcast %35 : f32 to vector<16x16xf32>
    %161 = arith.mulf %160, %159 : vector<16x16xf32>
    %162 = arith.addf %158, %161 : vector<16x16xf32>
    %163 = vector.extract_strided_slice %150 {offsets = [3, 0], sizes = [16, 16], strides = [1, 1]} : vector<24x16xf32> to vector<16x16xf32>
    %164 = vector.broadcast %42 : f32 to vector<16x16xf32>
    %165 = arith.mulf %164, %163 : vector<16x16xf32>
    %166 = arith.addf %162, %165 : vector<16x16xf32>
    %167 = vector.extract_strided_slice %150 {offsets = [4, 0], sizes = [16, 16], strides = [1, 1]} : vector<24x16xf32> to vector<16x16xf32>
    %168 = vector.broadcast %49 : f32 to vector<16x16xf32>
    %169 = arith.mulf %168, %167 : vector<16x16xf32>
    %170 = arith.addf %166, %169 : vector<16x16xf32>
    %171 = vector.extract_strided_slice %150 {offsets = [5, 0], sizes = [16, 16], strides = [1, 1]} : vector<24x16xf32> to vector<16x16xf32>
    %172 = vector.broadcast %56 : f32 to vector<16x16xf32>
    %173 = arith.mulf %172, %171 : vector<16x16xf32>
    %174 = arith.addf %170, %173 : vector<16x16xf32>
    %175 = vector.extract_strided_slice %150 {offsets = [6, 0], sizes = [16, 16], strides = [1, 1]} : vector<24x16xf32> to vector<16x16xf32>
    %176 = vector.broadcast %63 : f32 to vector<16x16xf32>
    %177 = arith.mulf %176, %175 : vector<16x16xf32>
    %178 = arith.addf %174, %177 : vector<16x16xf32>
    %179 = vector.extract_strided_slice %120 {offsets = [0, 2], sizes = [24, 16], strides = [1, 1]} : vector<24x128xf32> to vector<24x16xf32>
    %180 = vector.extract_strided_slice %179 {offsets = [0, 0], sizes = [16, 16], strides = [1, 1]} : vector<24x16xf32> to vector<16x16xf32>
    %181 = vector.broadcast %22 : f32 to vector<16x16xf32>
    %182 = arith.mulf %181, %180 : vector<16x16xf32>
    %183 = arith.addf %178, %182 : vector<16x16xf32>
    %184 = vector.extract_strided_slice %179 {offsets = [1, 0], sizes = [16, 16], strides = [1, 1]} : vector<24x16xf32> to vector<16x16xf32>
    %185 = vector.broadcast %29 : f32 to vector<16x16xf32>
    %186 = arith.mulf %185, %184 : vector<16x16xf32>
    %187 = arith.addf %183, %186 : vector<16x16xf32>
    %188 = vector.extract_strided_slice %179 {offsets = [2, 0], sizes = [16, 16], strides = [1, 1]} : vector<24x16xf32> to vector<16x16xf32>
    %189 = vector.broadcast %36 : f32 to vector<16x16xf32>
    %190 = arith.mulf %189, %188 : vector<16x16xf32>
    %191 = arith.addf %187, %190 : vector<16x16xf32>
    %192 = vector.extract_strided_slice %179 {offsets = [3, 0], sizes = [16, 16], strides = [1, 1]} : vector<24x16xf32> to vector<16x16xf32>
    %193 = vector.broadcast %43 : f32 to vector<16x16xf32>
    %194 = arith.mulf %193, %192 : vector<16x16xf32>
    %195 = arith.addf %191, %194 : vector<16x16xf32>
    %196 = vector.extract_strided_slice %179 {offsets = [4, 0], sizes = [16, 16], strides = [1, 1]} : vector<24x16xf32> to vector<16x16xf32>
    %197 = vector.broadcast %50 : f32 to vector<16x16xf32>
    %198 = arith.mulf %197, %196 : vector<16x16xf32>
    %199 = arith.addf %195, %198 : vector<16x16xf32>
    %200 = vector.extract_strided_slice %179 {offsets = [5, 0], sizes = [16, 16], strides = [1, 1]} : vector<24x16xf32> to vector<16x16xf32>
    %201 = vector.broadcast %57 : f32 to vector<16x16xf32>
    %202 = arith.mulf %201, %200 : vector<16x16xf32>
    %203 = arith.addf %199, %202 : vector<16x16xf32>
    %204 = vector.extract_strided_slice %179 {offsets = [6, 0], sizes = [16, 16], strides = [1, 1]} : vector<24x16xf32> to vector<16x16xf32>
    %205 = vector.broadcast %64 : f32 to vector<16x16xf32>
    %206 = arith.mulf %205, %204 : vector<16x16xf32>
    %207 = arith.addf %203, %206 : vector<16x16xf32>
    %208 = vector.extract_strided_slice %120 {offsets = [0, 3], sizes = [24, 16], strides = [1, 1]} : vector<24x128xf32> to vector<24x16xf32>
    %209 = vector.extract_strided_slice %208 {offsets = [0, 0], sizes = [16, 16], strides = [1, 1]} : vector<24x16xf32> to vector<16x16xf32>
    %210 = vector.broadcast %23 : f32 to vector<16x16xf32>
    %211 = arith.mulf %210, %209 : vector<16x16xf32>
    %212 = arith.addf %207, %211 : vector<16x16xf32>
    %213 = vector.extract_strided_slice %208 {offsets = [1, 0], sizes = [16, 16], strides = [1, 1]} : vector<24x16xf32> to vector<16x16xf32>
    %214 = vector.broadcast %30 : f32 to vector<16x16xf32>
    %215 = arith.mulf %214, %213 : vector<16x16xf32>
    %216 = arith.addf %212, %215 : vector<16x16xf32>
    %217 = vector.extract_strided_slice %208 {offsets = [2, 0], sizes = [16, 16], strides = [1, 1]} : vector<24x16xf32> to vector<16x16xf32>
    %218 = vector.broadcast %37 : f32 to vector<16x16xf32>
    %219 = arith.mulf %218, %217 : vector<16x16xf32>
    %220 = arith.addf %216, %219 : vector<16x16xf32>
    %221 = vector.extract_strided_slice %208 {offsets = [3, 0], sizes = [16, 16], strides = [1, 1]} : vector<24x16xf32> to vector<16x16xf32>
    %222 = vector.broadcast %44 : f32 to vector<16x16xf32>
    %223 = arith.mulf %222, %221 : vector<16x16xf32>
    %224 = arith.addf %220, %223 : vector<16x16xf32>
    %225 = vector.extract_strided_slice %208 {offsets = [4, 0], sizes = [16, 16], strides = [1, 1]} : vector<24x16xf32> to vector<16x16xf32>
    %226 = vector.broadcast %51 : f32 to vector<16x16xf32>
    %227 = arith.mulf %226, %225 : vector<16x16xf32>
    %228 = arith.addf %224, %227 : vector<16x16xf32>
    %229 = vector.extract_strided_slice %208 {offsets = [5, 0], sizes = [16, 16], strides = [1, 1]} : vector<24x16xf32> to vector<16x16xf32>
    %230 = vector.broadcast %58 : f32 to vector<16x16xf32>
    %231 = arith.mulf %230, %229 : vector<16x16xf32>
    %232 = arith.addf %228, %231 : vector<16x16xf32>
    %233 = vector.extract_strided_slice %208 {offsets = [6, 0], sizes = [16, 16], strides = [1, 1]} : vector<24x16xf32> to vector<16x16xf32>
    %234 = vector.broadcast %65 : f32 to vector<16x16xf32>
    %235 = arith.mulf %234, %233 : vector<16x16xf32>
    %236 = arith.addf %232, %235 : vector<16x16xf32>
    %237 = vector.extract_strided_slice %120 {offsets = [0, 4], sizes = [24, 16], strides = [1, 1]} : vector<24x128xf32> to vector<24x16xf32>
    %238 = vector.extract_strided_slice %237 {offsets = [0, 0], sizes = [16, 16], strides = [1, 1]} : vector<24x16xf32> to vector<16x16xf32>
    %239 = vector.broadcast %24 : f32 to vector<16x16xf32>
    %240 = arith.mulf %239, %238 : vector<16x16xf32>
    %241 = arith.addf %236, %240 : vector<16x16xf32>
    %242 = vector.extract_strided_slice %237 {offsets = [1, 0], sizes = [16, 16], strides = [1, 1]} : vector<24x16xf32> to vector<16x16xf32>
    %243 = vector.broadcast %31 : f32 to vector<16x16xf32>
    %244 = arith.mulf %243, %242 : vector<16x16xf32>
    %245 = arith.addf %241, %244 : vector<16x16xf32>
    %246 = vector.extract_strided_slice %237 {offsets = [2, 0], sizes = [16, 16], strides = [1, 1]} : vector<24x16xf32> to vector<16x16xf32>
    %247 = vector.broadcast %38 : f32 to vector<16x16xf32>
    %248 = arith.mulf %247, %246 : vector<16x16xf32>
    %249 = arith.addf %245, %248 : vector<16x16xf32>
    %250 = vector.extract_strided_slice %237 {offsets = [3, 0], sizes = [16, 16], strides = [1, 1]} : vector<24x16xf32> to vector<16x16xf32>
    %251 = vector.broadcast %45 : f32 to vector<16x16xf32>
    %252 = arith.mulf %251, %250 : vector<16x16xf32>
    %253 = arith.addf %249, %252 : vector<16x16xf32>
    %254 = vector.extract_strided_slice %237 {offsets = [4, 0], sizes = [16, 16], strides = [1, 1]} : vector<24x16xf32> to vector<16x16xf32>
    %255 = vector.broadcast %52 : f32 to vector<16x16xf32>
    %256 = arith.mulf %255, %254 : vector<16x16xf32>
    %257 = arith.addf %253, %256 : vector<16x16xf32>
    %258 = vector.extract_strided_slice %237 {offsets = [5, 0], sizes = [16, 16], strides = [1, 1]} : vector<24x16xf32> to vector<16x16xf32>
    %259 = vector.broadcast %59 : f32 to vector<16x16xf32>
    %260 = arith.mulf %259, %258 : vector<16x16xf32>
    %261 = arith.addf %257, %260 : vector<16x16xf32>
    %262 = vector.extract_strided_slice %237 {offsets = [6, 0], sizes = [16, 16], strides = [1, 1]} : vector<24x16xf32> to vector<16x16xf32>
    %263 = vector.broadcast %66 : f32 to vector<16x16xf32>
    %264 = arith.mulf %263, %262 : vector<16x16xf32>
    %265 = arith.addf %261, %264 : vector<16x16xf32>
    %266 = vector.extract_strided_slice %120 {offsets = [0, 5], sizes = [24, 16], strides = [1, 1]} : vector<24x128xf32> to vector<24x16xf32>
    %267 = vector.extract_strided_slice %266 {offsets = [0, 0], sizes = [16, 16], strides = [1, 1]} : vector<24x16xf32> to vector<16x16xf32>
    %268 = vector.broadcast %25 : f32 to vector<16x16xf32>
    %269 = arith.mulf %268, %267 : vector<16x16xf32>
    %270 = arith.addf %265, %269 : vector<16x16xf32>
    %271 = vector.extract_strided_slice %266 {offsets = [1, 0], sizes = [16, 16], strides = [1, 1]} : vector<24x16xf32> to vector<16x16xf32>
    %272 = vector.broadcast %32 : f32 to vector<16x16xf32>
    %273 = arith.mulf %272, %271 : vector<16x16xf32>
    %274 = arith.addf %270, %273 : vector<16x16xf32>
    %275 = vector.extract_strided_slice %266 {offsets = [2, 0], sizes = [16, 16], strides = [1, 1]} : vector<24x16xf32> to vector<16x16xf32>
    %276 = vector.broadcast %39 : f32 to vector<16x16xf32>
    %277 = arith.mulf %276, %275 : vector<16x16xf32>
    %278 = arith.addf %274, %277 : vector<16x16xf32>
    %279 = vector.extract_strided_slice %266 {offsets = [3, 0], sizes = [16, 16], strides = [1, 1]} : vector<24x16xf32> to vector<16x16xf32>
    %280 = vector.broadcast %46 : f32 to vector<16x16xf32>
    %281 = arith.mulf %280, %279 : vector<16x16xf32>
    %282 = arith.addf %278, %281 : vector<16x16xf32>
    %283 = vector.extract_strided_slice %266 {offsets = [4, 0], sizes = [16, 16], strides = [1, 1]} : vector<24x16xf32> to vector<16x16xf32>
    %284 = vector.broadcast %53 : f32 to vector<16x16xf32>
    %285 = arith.mulf %284, %283 : vector<16x16xf32>
    %286 = arith.addf %282, %285 : vector<16x16xf32>
    %287 = vector.extract_strided_slice %266 {offsets = [5, 0], sizes = [16, 16], strides = [1, 1]} : vector<24x16xf32> to vector<16x16xf32>
    %288 = vector.broadcast %60 : f32 to vector<16x16xf32>
    %289 = arith.mulf %288, %287 : vector<16x16xf32>
    %290 = arith.addf %286, %289 : vector<16x16xf32>
    %291 = vector.extract_strided_slice %266 {offsets = [6, 0], sizes = [16, 16], strides = [1, 1]} : vector<24x16xf32> to vector<16x16xf32>
    %292 = vector.broadcast %67 : f32 to vector<16x16xf32>
    %293 = arith.mulf %292, %291 : vector<16x16xf32>
    %294 = arith.addf %290, %293 : vector<16x16xf32>
    %295 = vector.extract_strided_slice %120 {offsets = [0, 6], sizes = [24, 16], strides = [1, 1]} : vector<24x128xf32> to vector<24x16xf32>
    %296 = vector.extract_strided_slice %295 {offsets = [0, 0], sizes = [16, 16], strides = [1, 1]} : vector<24x16xf32> to vector<16x16xf32>
    %297 = vector.broadcast %26 : f32 to vector<16x16xf32>
    %298 = arith.mulf %297, %296 : vector<16x16xf32>
    %299 = arith.addf %294, %298 : vector<16x16xf32>
    %300 = vector.extract_strided_slice %295 {offsets = [1, 0], sizes = [16, 16], strides = [1, 1]} : vector<24x16xf32> to vector<16x16xf32>
    %301 = vector.broadcast %33 : f32 to vector<16x16xf32>
    %302 = arith.mulf %301, %300 : vector<16x16xf32>
    %303 = arith.addf %299, %302 : vector<16x16xf32>
    %304 = vector.extract_strided_slice %295 {offsets = [2, 0], sizes = [16, 16], strides = [1, 1]} : vector<24x16xf32> to vector<16x16xf32>
    %305 = vector.broadcast %40 : f32 to vector<16x16xf32>
    %306 = arith.mulf %305, %304 : vector<16x16xf32>
    %307 = arith.addf %303, %306 : vector<16x16xf32>
    %308 = vector.extract_strided_slice %295 {offsets = [3, 0], sizes = [16, 16], strides = [1, 1]} : vector<24x16xf32> to vector<16x16xf32>
    %309 = vector.broadcast %47 : f32 to vector<16x16xf32>
    %310 = arith.mulf %309, %308 : vector<16x16xf32>
    %311 = arith.addf %307, %310 : vector<16x16xf32>
    %312 = vector.extract_strided_slice %295 {offsets = [4, 0], sizes = [16, 16], strides = [1, 1]} : vector<24x16xf32> to vector<16x16xf32>
    %313 = vector.broadcast %54 : f32 to vector<16x16xf32>
    %314 = arith.mulf %313, %312 : vector<16x16xf32>
    %315 = arith.addf %311, %314 : vector<16x16xf32>
    %316 = vector.extract_strided_slice %295 {offsets = [5, 0], sizes = [16, 16], strides = [1, 1]} : vector<24x16xf32> to vector<16x16xf32>
    %317 = vector.broadcast %61 : f32 to vector<16x16xf32>
    %318 = arith.mulf %317, %316 : vector<16x16xf32>
    %319 = arith.addf %315, %318 : vector<16x16xf32>
    %320 = vector.extract_strided_slice %295 {offsets = [6, 0], sizes = [16, 16], strides = [1, 1]} : vector<24x16xf32> to vector<16x16xf32>
    %321 = vector.broadcast %68 : f32 to vector<16x16xf32>
    %322 = arith.mulf %321, %320 : vector<16x16xf32>
    %323 = arith.addf %319, %322 : vector<16x16xf32>
    %c1_32 = arith.constant 1 : index
    %c0_33 = arith.constant 0 : index
    %c0_34 = arith.constant 0 : index
    %324 = vector.load %arg5[%c1_32, %c0_33, %c0_34] : memref<2x24x128xf32, #tpu.memory_space<vmem>>, vector<1x24x128xf32>
    %325 = vector.shape_cast %324 : vector<1x24x128xf32> to vector<24x128xf32>
    %326 = vector.extract_strided_slice %325 {offsets = [0, 0], sizes = [24, 16], strides = [1, 1]} : vector<24x128xf32> to vector<24x16xf32>
    %327 = vector.extract_strided_slice %326 {offsets = [0, 0], sizes = [16, 16], strides = [1, 1]} : vector<24x16xf32> to vector<16x16xf32>
    %328 = vector.broadcast %69 : f32 to vector<16x16xf32>
    %329 = arith.mulf %328, %327 : vector<16x16xf32>
    %330 = arith.addf %323, %329 : vector<16x16xf32>
    %331 = vector.extract_strided_slice %326 {offsets = [1, 0], sizes = [16, 16], strides = [1, 1]} : vector<24x16xf32> to vector<16x16xf32>
    %332 = vector.broadcast %76 : f32 to vector<16x16xf32>
    %333 = arith.mulf %332, %331 : vector<16x16xf32>
    %334 = arith.addf %330, %333 : vector<16x16xf32>
    %335 = vector.extract_strided_slice %326 {offsets = [2, 0], sizes = [16, 16], strides = [1, 1]} : vector<24x16xf32> to vector<16x16xf32>
    %336 = vector.broadcast %83 : f32 to vector<16x16xf32>
    %337 = arith.mulf %336, %335 : vector<16x16xf32>
    %338 = arith.addf %334, %337 : vector<16x16xf32>
    %339 = vector.extract_strided_slice %326 {offsets = [3, 0], sizes = [16, 16], strides = [1, 1]} : vector<24x16xf32> to vector<16x16xf32>
    %340 = vector.broadcast %90 : f32 to vector<16x16xf32>
    %341 = arith.mulf %340, %339 : vector<16x16xf32>
    %342 = arith.addf %338, %341 : vector<16x16xf32>
    %343 = vector.extract_strided_slice %326 {offsets = [4, 0], sizes = [16, 16], strides = [1, 1]} : vector<24x16xf32> to vector<16x16xf32>
    %344 = vector.broadcast %97 : f32 to vector<16x16xf32>
    %345 = arith.mulf %344, %343 : vector<16x16xf32>
    %346 = arith.addf %342, %345 : vector<16x16xf32>
    %347 = vector.extract_strided_slice %326 {offsets = [5, 0], sizes = [16, 16], strides = [1, 1]} : vector<24x16xf32> to vector<16x16xf32>
    %348 = vector.broadcast %104 : f32 to vector<16x16xf32>
    %349 = arith.mulf %348, %347 : vector<16x16xf32>
    %350 = arith.addf %346, %349 : vector<16x16xf32>
    %351 = vector.extract_strided_slice %326 {offsets = [6, 0], sizes = [16, 16], strides = [1, 1]} : vector<24x16xf32> to vector<16x16xf32>
    %352 = vector.broadcast %111 : f32 to vector<16x16xf32>
    %353 = arith.mulf %352, %351 : vector<16x16xf32>
    %354 = arith.addf %350, %353 : vector<16x16xf32>
    %355 = vector.extract_strided_slice %325 {offsets = [0, 1], sizes = [24, 16], strides = [1, 1]} : vector<24x128xf32> to vector<24x16xf32>
    %356 = vector.extract_strided_slice %355 {offsets = [0, 0], sizes = [16, 16], strides = [1, 1]} : vector<24x16xf32> to vector<16x16xf32>
    %357 = vector.broadcast %70 : f32 to vector<16x16xf32>
    %358 = arith.mulf %357, %356 : vector<16x16xf32>
    %359 = arith.addf %354, %358 : vector<16x16xf32>
    %360 = vector.extract_strided_slice %355 {offsets = [1, 0], sizes = [16, 16], strides = [1, 1]} : vector<24x16xf32> to vector<16x16xf32>
    %361 = vector.broadcast %77 : f32 to vector<16x16xf32>
    %362 = arith.mulf %361, %360 : vector<16x16xf32>
    %363 = arith.addf %359, %362 : vector<16x16xf32>
    %364 = vector.extract_strided_slice %355 {offsets = [2, 0], sizes = [16, 16], strides = [1, 1]} : vector<24x16xf32> to vector<16x16xf32>
    %365 = vector.broadcast %84 : f32 to vector<16x16xf32>
    %366 = arith.mulf %365, %364 : vector<16x16xf32>
    %367 = arith.addf %363, %366 : vector<16x16xf32>
    %368 = vector.extract_strided_slice %355 {offsets = [3, 0], sizes = [16, 16], strides = [1, 1]} : vector<24x16xf32> to vector<16x16xf32>
    %369 = vector.broadcast %91 : f32 to vector<16x16xf32>
    %370 = arith.mulf %369, %368 : vector<16x16xf32>
    %371 = arith.addf %367, %370 : vector<16x16xf32>
    %372 = vector.extract_strided_slice %355 {offsets = [4, 0], sizes = [16, 16], strides = [1, 1]} : vector<24x16xf32> to vector<16x16xf32>
    %373 = vector.broadcast %98 : f32 to vector<16x16xf32>
    %374 = arith.mulf %373, %372 : vector<16x16xf32>
    %375 = arith.addf %371, %374 : vector<16x16xf32>
    %376 = vector.extract_strided_slice %355 {offsets = [5, 0], sizes = [16, 16], strides = [1, 1]} : vector<24x16xf32> to vector<16x16xf32>
    %377 = vector.broadcast %105 : f32 to vector<16x16xf32>
    %378 = arith.mulf %377, %376 : vector<16x16xf32>
    %379 = arith.addf %375, %378 : vector<16x16xf32>
    %380 = vector.extract_strided_slice %355 {offsets = [6, 0], sizes = [16, 16], strides = [1, 1]} : vector<24x16xf32> to vector<16x16xf32>
    %381 = vector.broadcast %112 : f32 to vector<16x16xf32>
    %382 = arith.mulf %381, %380 : vector<16x16xf32>
    %383 = arith.addf %379, %382 : vector<16x16xf32>
    %384 = vector.extract_strided_slice %325 {offsets = [0, 2], sizes = [24, 16], strides = [1, 1]} : vector<24x128xf32> to vector<24x16xf32>
    %385 = vector.extract_strided_slice %384 {offsets = [0, 0], sizes = [16, 16], strides = [1, 1]} : vector<24x16xf32> to vector<16x16xf32>
    %386 = vector.broadcast %71 : f32 to vector<16x16xf32>
    %387 = arith.mulf %386, %385 : vector<16x16xf32>
    %388 = arith.addf %383, %387 : vector<16x16xf32>
    %389 = vector.extract_strided_slice %384 {offsets = [1, 0], sizes = [16, 16], strides = [1, 1]} : vector<24x16xf32> to vector<16x16xf32>
    %390 = vector.broadcast %78 : f32 to vector<16x16xf32>
    %391 = arith.mulf %390, %389 : vector<16x16xf32>
    %392 = arith.addf %388, %391 : vector<16x16xf32>
    %393 = vector.extract_strided_slice %384 {offsets = [2, 0], sizes = [16, 16], strides = [1, 1]} : vector<24x16xf32> to vector<16x16xf32>
    %394 = vector.broadcast %85 : f32 to vector<16x16xf32>
    %395 = arith.mulf %394, %393 : vector<16x16xf32>
    %396 = arith.addf %392, %395 : vector<16x16xf32>
    %397 = vector.extract_strided_slice %384 {offsets = [3, 0], sizes = [16, 16], strides = [1, 1]} : vector<24x16xf32> to vector<16x16xf32>
    %398 = vector.broadcast %92 : f32 to vector<16x16xf32>
    %399 = arith.mulf %398, %397 : vector<16x16xf32>
    %400 = arith.addf %396, %399 : vector<16x16xf32>
    %401 = vector.extract_strided_slice %384 {offsets = [4, 0], sizes = [16, 16], strides = [1, 1]} : vector<24x16xf32> to vector<16x16xf32>
    %402 = vector.broadcast %99 : f32 to vector<16x16xf32>
    %403 = arith.mulf %402, %401 : vector<16x16xf32>
    %404 = arith.addf %400, %403 : vector<16x16xf32>
    %405 = vector.extract_strided_slice %384 {offsets = [5, 0], sizes = [16, 16], strides = [1, 1]} : vector<24x16xf32> to vector<16x16xf32>
    %406 = vector.broadcast %106 : f32 to vector<16x16xf32>
    %407 = arith.mulf %406, %405 : vector<16x16xf32>
    %408 = arith.addf %404, %407 : vector<16x16xf32>
    %409 = vector.extract_strided_slice %384 {offsets = [6, 0], sizes = [16, 16], strides = [1, 1]} : vector<24x16xf32> to vector<16x16xf32>
    %410 = vector.broadcast %113 : f32 to vector<16x16xf32>
    %411 = arith.mulf %410, %409 : vector<16x16xf32>
    %412 = arith.addf %408, %411 : vector<16x16xf32>
    %413 = vector.extract_strided_slice %325 {offsets = [0, 3], sizes = [24, 16], strides = [1, 1]} : vector<24x128xf32> to vector<24x16xf32>
    %414 = vector.extract_strided_slice %413 {offsets = [0, 0], sizes = [16, 16], strides = [1, 1]} : vector<24x16xf32> to vector<16x16xf32>
    %415 = vector.broadcast %72 : f32 to vector<16x16xf32>
    %416 = arith.mulf %415, %414 : vector<16x16xf32>
    %417 = arith.addf %412, %416 : vector<16x16xf32>
    %418 = vector.extract_strided_slice %413 {offsets = [1, 0], sizes = [16, 16], strides = [1, 1]} : vector<24x16xf32> to vector<16x16xf32>
    %419 = vector.broadcast %79 : f32 to vector<16x16xf32>
    %420 = arith.mulf %419, %418 : vector<16x16xf32>
    %421 = arith.addf %417, %420 : vector<16x16xf32>
    %422 = vector.extract_strided_slice %413 {offsets = [2, 0], sizes = [16, 16], strides = [1, 1]} : vector<24x16xf32> to vector<16x16xf32>
    %423 = vector.broadcast %86 : f32 to vector<16x16xf32>
    %424 = arith.mulf %423, %422 : vector<16x16xf32>
    %425 = arith.addf %421, %424 : vector<16x16xf32>
    %426 = vector.extract_strided_slice %413 {offsets = [3, 0], sizes = [16, 16], strides = [1, 1]} : vector<24x16xf32> to vector<16x16xf32>
    %427 = vector.broadcast %93 : f32 to vector<16x16xf32>
    %428 = arith.mulf %427, %426 : vector<16x16xf32>
    %429 = arith.addf %425, %428 : vector<16x16xf32>
    %430 = vector.extract_strided_slice %413 {offsets = [4, 0], sizes = [16, 16], strides = [1, 1]} : vector<24x16xf32> to vector<16x16xf32>
    %431 = vector.broadcast %100 : f32 to vector<16x16xf32>
    %432 = arith.mulf %431, %430 : vector<16x16xf32>
    %433 = arith.addf %429, %432 : vector<16x16xf32>
    %434 = vector.extract_strided_slice %413 {offsets = [5, 0], sizes = [16, 16], strides = [1, 1]} : vector<24x16xf32> to vector<16x16xf32>
    %435 = vector.broadcast %107 : f32 to vector<16x16xf32>
    %436 = arith.mulf %435, %434 : vector<16x16xf32>
    %437 = arith.addf %433, %436 : vector<16x16xf32>
    %438 = vector.extract_strided_slice %413 {offsets = [6, 0], sizes = [16, 16], strides = [1, 1]} : vector<24x16xf32> to vector<16x16xf32>
    %439 = vector.broadcast %114 : f32 to vector<16x16xf32>
    %440 = arith.mulf %439, %438 : vector<16x16xf32>
    %441 = arith.addf %437, %440 : vector<16x16xf32>
    %442 = vector.extract_strided_slice %325 {offsets = [0, 4], sizes = [24, 16], strides = [1, 1]} : vector<24x128xf32> to vector<24x16xf32>
    %443 = vector.extract_strided_slice %442 {offsets = [0, 0], sizes = [16, 16], strides = [1, 1]} : vector<24x16xf32> to vector<16x16xf32>
    %444 = vector.broadcast %73 : f32 to vector<16x16xf32>
    %445 = arith.mulf %444, %443 : vector<16x16xf32>
    %446 = arith.addf %441, %445 : vector<16x16xf32>
    %447 = vector.extract_strided_slice %442 {offsets = [1, 0], sizes = [16, 16], strides = [1, 1]} : vector<24x16xf32> to vector<16x16xf32>
    %448 = vector.broadcast %80 : f32 to vector<16x16xf32>
    %449 = arith.mulf %448, %447 : vector<16x16xf32>
    %450 = arith.addf %446, %449 : vector<16x16xf32>
    %451 = vector.extract_strided_slice %442 {offsets = [2, 0], sizes = [16, 16], strides = [1, 1]} : vector<24x16xf32> to vector<16x16xf32>
    %452 = vector.broadcast %87 : f32 to vector<16x16xf32>
    %453 = arith.mulf %452, %451 : vector<16x16xf32>
    %454 = arith.addf %450, %453 : vector<16x16xf32>
    %455 = vector.extract_strided_slice %442 {offsets = [3, 0], sizes = [16, 16], strides = [1, 1]} : vector<24x16xf32> to vector<16x16xf32>
    %456 = vector.broadcast %94 : f32 to vector<16x16xf32>
    %457 = arith.mulf %456, %455 : vector<16x16xf32>
    %458 = arith.addf %454, %457 : vector<16x16xf32>
    %459 = vector.extract_strided_slice %442 {offsets = [4, 0], sizes = [16, 16], strides = [1, 1]} : vector<24x16xf32> to vector<16x16xf32>
    %460 = vector.broadcast %101 : f32 to vector<16x16xf32>
    %461 = arith.mulf %460, %459 : vector<16x16xf32>
    %462 = arith.addf %458, %461 : vector<16x16xf32>
    %463 = vector.extract_strided_slice %442 {offsets = [5, 0], sizes = [16, 16], strides = [1, 1]} : vector<24x16xf32> to vector<16x16xf32>
    %464 = vector.broadcast %108 : f32 to vector<16x16xf32>
    %465 = arith.mulf %464, %463 : vector<16x16xf32>
    %466 = arith.addf %462, %465 : vector<16x16xf32>
    %467 = vector.extract_strided_slice %442 {offsets = [6, 0], sizes = [16, 16], strides = [1, 1]} : vector<24x16xf32> to vector<16x16xf32>
    %468 = vector.broadcast %115 : f32 to vector<16x16xf32>
    %469 = arith.mulf %468, %467 : vector<16x16xf32>
    %470 = arith.addf %466, %469 : vector<16x16xf32>
    %471 = vector.extract_strided_slice %325 {offsets = [0, 5], sizes = [24, 16], strides = [1, 1]} : vector<24x128xf32> to vector<24x16xf32>
    %472 = vector.extract_strided_slice %471 {offsets = [0, 0], sizes = [16, 16], strides = [1, 1]} : vector<24x16xf32> to vector<16x16xf32>
    %473 = vector.broadcast %74 : f32 to vector<16x16xf32>
    %474 = arith.mulf %473, %472 : vector<16x16xf32>
    %475 = arith.addf %470, %474 : vector<16x16xf32>
    %476 = vector.extract_strided_slice %471 {offsets = [1, 0], sizes = [16, 16], strides = [1, 1]} : vector<24x16xf32> to vector<16x16xf32>
    %477 = vector.broadcast %81 : f32 to vector<16x16xf32>
    %478 = arith.mulf %477, %476 : vector<16x16xf32>
    %479 = arith.addf %475, %478 : vector<16x16xf32>
    %480 = vector.extract_strided_slice %471 {offsets = [2, 0], sizes = [16, 16], strides = [1, 1]} : vector<24x16xf32> to vector<16x16xf32>
    %481 = vector.broadcast %88 : f32 to vector<16x16xf32>
    %482 = arith.mulf %481, %480 : vector<16x16xf32>
    %483 = arith.addf %479, %482 : vector<16x16xf32>
    %484 = vector.extract_strided_slice %471 {offsets = [3, 0], sizes = [16, 16], strides = [1, 1]} : vector<24x16xf32> to vector<16x16xf32>
    %485 = vector.broadcast %95 : f32 to vector<16x16xf32>
    %486 = arith.mulf %485, %484 : vector<16x16xf32>
    %487 = arith.addf %483, %486 : vector<16x16xf32>
    %488 = vector.extract_strided_slice %471 {offsets = [4, 0], sizes = [16, 16], strides = [1, 1]} : vector<24x16xf32> to vector<16x16xf32>
    %489 = vector.broadcast %102 : f32 to vector<16x16xf32>
    %490 = arith.mulf %489, %488 : vector<16x16xf32>
    %491 = arith.addf %487, %490 : vector<16x16xf32>
    %492 = vector.extract_strided_slice %471 {offsets = [5, 0], sizes = [16, 16], strides = [1, 1]} : vector<24x16xf32> to vector<16x16xf32>
    %493 = vector.broadcast %109 : f32 to vector<16x16xf32>
    %494 = arith.mulf %493, %492 : vector<16x16xf32>
    %495 = arith.addf %491, %494 : vector<16x16xf32>
    %496 = vector.extract_strided_slice %471 {offsets = [6, 0], sizes = [16, 16], strides = [1, 1]} : vector<24x16xf32> to vector<16x16xf32>
    %497 = vector.broadcast %116 : f32 to vector<16x16xf32>
    %498 = arith.mulf %497, %496 : vector<16x16xf32>
    %499 = arith.addf %495, %498 : vector<16x16xf32>
    %500 = vector.extract_strided_slice %325 {offsets = [0, 6], sizes = [24, 16], strides = [1, 1]} : vector<24x128xf32> to vector<24x16xf32>
    %501 = vector.extract_strided_slice %500 {offsets = [0, 0], sizes = [16, 16], strides = [1, 1]} : vector<24x16xf32> to vector<16x16xf32>
    %502 = vector.broadcast %75 : f32 to vector<16x16xf32>
    %503 = arith.mulf %502, %501 : vector<16x16xf32>
    %504 = arith.addf %499, %503 : vector<16x16xf32>
    %505 = vector.extract_strided_slice %500 {offsets = [1, 0], sizes = [16, 16], strides = [1, 1]} : vector<24x16xf32> to vector<16x16xf32>
    %506 = vector.broadcast %82 : f32 to vector<16x16xf32>
    %507 = arith.mulf %506, %505 : vector<16x16xf32>
    %508 = arith.addf %504, %507 : vector<16x16xf32>
    %509 = vector.extract_strided_slice %500 {offsets = [2, 0], sizes = [16, 16], strides = [1, 1]} : vector<24x16xf32> to vector<16x16xf32>
    %510 = vector.broadcast %89 : f32 to vector<16x16xf32>
    %511 = arith.mulf %510, %509 : vector<16x16xf32>
    %512 = arith.addf %508, %511 : vector<16x16xf32>
    %513 = vector.extract_strided_slice %500 {offsets = [3, 0], sizes = [16, 16], strides = [1, 1]} : vector<24x16xf32> to vector<16x16xf32>
    %514 = vector.broadcast %96 : f32 to vector<16x16xf32>
    %515 = arith.mulf %514, %513 : vector<16x16xf32>
    %516 = arith.addf %512, %515 : vector<16x16xf32>
    %517 = vector.extract_strided_slice %500 {offsets = [4, 0], sizes = [16, 16], strides = [1, 1]} : vector<24x16xf32> to vector<16x16xf32>
    %518 = vector.broadcast %103 : f32 to vector<16x16xf32>
    %519 = arith.mulf %518, %517 : vector<16x16xf32>
    %520 = arith.addf %516, %519 : vector<16x16xf32>
    %521 = vector.extract_strided_slice %500 {offsets = [5, 0], sizes = [16, 16], strides = [1, 1]} : vector<24x16xf32> to vector<16x16xf32>
    %522 = vector.broadcast %110 : f32 to vector<16x16xf32>
    %523 = arith.mulf %522, %521 : vector<16x16xf32>
    %524 = arith.addf %520, %523 : vector<16x16xf32>
    %525 = vector.extract_strided_slice %500 {offsets = [6, 0], sizes = [16, 16], strides = [1, 1]} : vector<24x16xf32> to vector<16x16xf32>
    %526 = vector.broadcast %117 : f32 to vector<16x16xf32>
    %527 = arith.mulf %526, %525 : vector<16x16xf32>
    %528 = arith.addf %524, %527 : vector<16x16xf32>
    %c0_35 = arith.constant 0 : index
    %529 = memref.load %arg2[%c0_35] : memref<2xf32, #tpu.memory_space<smem>>
    %530 = vector.broadcast %529 : f32 to vector<16x16xf32>
    %531 = arith.mulf %528, %530 : vector<16x16xf32>
    %c1_36 = arith.constant 1 : index
    %532 = memref.load %arg2[%c1_36] : memref<2xf32, #tpu.memory_space<smem>>
    %533 = vector.broadcast %532 : f32 to vector<16x16xf32>
    %534 = arith.addf %531, %533 : vector<16x16xf32>
    %535 = arith.negf %534 : vector<16x16xf32>
    %536 = math.exp %535 : vector<16x16xf32>
    %cst_37 = arith.constant 1.000000e+00 : f32
    %537 = vector.broadcast %cst_37 : f32 to vector<16x16xf32>
    %538 = arith.addf %537, %536 : vector<16x16xf32>
    %539 = arith.divf %537, %538 : vector<16x16xf32>
    %c0_i32 = arith.constant 0 : i32
    %c4_i32 = arith.constant 4 : i32
    %540 = arith.addi %c0_i32, %c4_i32 : i32
    %c1_i32_38 = arith.constant 1 : i32
    scf.for %arg6 = %c0_i32 to %540 step %c1_i32_38  : i32 {
      %c0_40 = arith.constant 0 : index
      %541 = arith.index_cast %arg6 : i32 to index
      %c0_41 = arith.constant 0 : index
      %c0_42 = arith.constant 0 : index
      %542 = vector.load %arg3[%c0_40, %541, %c0_41, %c0_42] : memref<1x4x16x16xf32, #tpu.memory_space<vmem>>, vector<1x1x16x16xf32>
      %543 = vector.shape_cast %542 : vector<1x1x16x16xf32> to vector<16x16xf32>
      %544 = arith.mulf %543, %539 : vector<16x16xf32>
      %c0_43 = arith.constant 0 : index
      %545 = arith.index_cast %arg6 : i32 to index
      %c0_44 = arith.constant 0 : index
      %c0_45 = arith.constant 0 : index
      %546 = vector.load %arg4[%c0_43, %545, %c0_44, %c0_45] : memref<1x4x16x16xf32, #tpu.memory_space<vmem>>, vector<1x1x16x16xf32>
      %547 = vector.shape_cast %546 : vector<1x1x16x16xf32> to vector<16x16xf32>
      %548 = vector.shape_cast %544 : vector<16x16xf32> to vector<1x1x16x16xf32>
      tpu.vector_store %arg4[%c0_43, %545, %c0_44, %c0_45], %548 {strides = array<i32>} : memref<1x4x16x16xf32, #tpu.memory_space<vmem>>, vector<1x1x16x16xf32>,
    }
    %c4_i32_39 = arith.constant 4 : i32
    return
  }
  func.func @transform_0(%arg0: i32) -> i32 {
    %c0_i32 = arith.constant 0 : i32
    %c0_i32_0 = arith.constant 0 : i32
    return %c0_i32 : i32
  }
  func.func @transform_1(%arg0: i32) -> i32 {
    %c0_i32 = arith.constant 0 : i32
    %c0_i32_0 = arith.constant 0 : i32
    return %c0_i32 : i32
  }
  func.func @transform_2(%arg0: i32) -> (i32, i32, i32, i32) {
    %c0_i32 = arith.constant 0 : i32
    %c0_i32_0 = arith.constant 0 : i32
    %c0_i32_1 = arith.constant 0 : i32
    %c0_i32_2 = arith.constant 0 : i32
    return %arg0, %c0_i32, %c0_i32_0, %c0_i32_1 : i32, i32, i32, i32
  }
  func.func @transform_3(%arg0: i32) -> (i32, i32, i32, i32) {
    %c0_i32 = arith.constant 0 : i32
    %c0_i32_0 = arith.constant 0 : i32
    %c0_i32_1 = arith.constant 0 : i32
    %c0_i32_2 = arith.constant 0 : i32
    return %arg0, %c0_i32, %c0_i32_0, %c0_i32_1 : i32, i32, i32, i32
  }
}

</mosaic_0001>

<llo_original>
// kernel: tpu_custom_call.1
$region0: #{tpu_custom_call.1}
  #allocation0 [shape = 'u32[]', space=smem, size = 0x4, offset = 0x4, fixed_abs, tag = 'smem constant byte address 0x4 - core index']
  #allocation1 [shape = 'u32[144,128]{1,0:T(1,128)}', space=vmem, size = 0x12000, scoped, tag = 'internal scratch']
  #allocation2 [shape = 'f32[2,24,128]{2,1,0:T(8,128)}', space=vmem, size = 0x6000, scoped, tag = 'scratch operand']
  %s0 = inlined_call_operand.hbm [shape: f32[98], index: 0, kind: input, shape index: {}]
  %s1 = inlined_call_operand.vmem [shape: f32[2], index: 1, kind: input, shape index: {}]
  %s2 = inlined_call_operand.hbm [shape: f32[2,4,16,16], index: 2, kind: input, shape index: {}]
  %s3 = inlined_call_operand.hbm [shape: f32[2,4,16,16], index: 3, kind: output, shape index: {}]
  %s4 = sld [smem:[#allocation0]]
  $region71: #{tpu_custom_call.1} parent=0
    _
  %s6 = ssub.s32 1, %s4
  %s7 = scalar_select 0, %s6, %s4
  $region1: #{tpu_custom_call.1} parent=0
    #allocation3 [shape = 'u8[512]{0}', space=smem, size = 0x200, scoped, tag = 'input window, operand 0, single buffered']
    #allocation4 [shape = 's32[2]{0}', space=sflag, size = 0x8, scoped, tag = 'scoped memory for tpu_custom_call.1']
    #allocation5 [shape = 's32[2]{0}', space=sflag, size = 0x8, scoped, tag = 'scoped memory for tpu_custom_call.1']
    #allocation6 [shape = 's32[2]{0}', space=sflag, size = 0x8, scoped, tag = 'scoped memory for tpu_custom_call.1']
    #allocation7 [shape = 's32[2]{0}', space=sflag, size = 0x8, scoped, tag = 'scoped memory for tpu_custom_call.1']
    #allocation8 [shape = 'u8[512]{0}', space=smem, size = 0x200, scoped, tag = 'input window, operand 1, single buffered']
    #allocation9 [shape = 'u8[65536]{0}', space=vmem, size = 0x10000, scoped, tag = 'input window, operand 2']
    #allocation10 [shape = 'u8[65536]{0}', space=vmem, size = 0x10000, scoped, tag = 'output window, operand 0']
    %8 = vsyncpa [#allocation6], 0
    %9 = vsyncpa [#allocation7], 0
    %10 = vsyncpa [#allocation4], 0
    %s11 = scalar_lea.sflag [#allocation4], 1
    %12 = vsyncpa %s11, 0
    %13 = vsyncpa [#allocation5], 0
    %s14 = scalar_lea.sflag [#allocation5], 1
    %15 = vsyncpa %s14, 0
    loop: start=0, step=1, limit=4
    $region2: #{tpu_custom_call.1} parent=1 // loop_pre_header
      _
    $region3: #{tpu_custom_call.1} parent=1 // loop_header
      %s17 = sphi 0, %s21
      %p18 = scmp.ge.s32.totalorder %s17, 4
      %s25 = sphi 0, %s25
      %s27 = sphi 0, %s25
      %s28 = sphi 0, %s27
      %s42 = sphi 0, %s28
      %s46 = sphi 0, %s46
      %s48 = sphi 0, %s46
      %s49 = sphi 0, %s48
      %s63 = sphi 0, %s49
      %s69 = sphi 0, %s71
      %s72 = sphi 0, %s69
      %s73 = sphi 0, %s72
      %s89 = sphi 0, %s73
      %s95 = sphi 0, %s97
      %s98 = sphi 0, %s95
      %s99 = sphi 0, %s98
      %s115 = sphi 0, %s99
    $region4: #{tpu_custom_call.1} parent=1 // loop_header_branch
      %20 = sbr.rel (%p18) target = $region8
    $region5: #{tpu_custom_call.1} parent=1 // loop_body
      %s22 = ssub.s32 %s17, 1
      %s23 = ssub.s32 %s17, 2
      %s24 = sadd.s32 %s17, 1
      %s26 = sadd.s32 %s25, 1
      %p29 = scmp.eq.s32.totalorder %s17, 1
      %p30 = scmp.ne.s32.totalorder %s25, %s27
      %p31 = scmp.eq.s32.totalorder %s17, 0
      %p32 = por %p30, %p31
      %p33 = scmp.ne.s32.totalorder %s25, %s27
      %p34 = scmp.eq.s32.totalorder %s22, 1
      %p35 = por %p33, %p34
      %p36 = scmp.ne.s32.totalorder %s27, %s28
      %p37 = scmp.eq.s32.totalorder %s22, 0
      %p38 = por %p36, %p37
      %p39 = scmp.ne.s32.totalorder %s27, %s28
      %p40 = scmp.eq.s32.totalorder %s23, 1
      %p41 = por %p39, %p40
      %p43 = scmp.ne.s32.totalorder %s28, %s42
      %p44 = scmp.eq.s32.totalorder %s23, 0
      %p45 = por %p43, %p44
      %s47 = sadd.s32 %s46, 1
      %p50 = scmp.eq.s32.totalorder %s17, 1
      %p51 = scmp.ne.s32.totalorder %s46, %s48
      %p52 = scmp.eq.s32.totalorder %s17, 0
      %p53 = por %p51, %p52
      %p54 = scmp.ne.s32.totalorder %s46, %s48
      %p55 = scmp.eq.s32.totalorder %s22, 1
      %p56 = por %p54, %p55
      %p57 = scmp.ne.s32.totalorder %s48, %s49
      %p58 = scmp.eq.s32.totalorder %s22, 0
      %p59 = por %p57, %p58
      %p60 = scmp.ne.s32.totalorder %s48, %s49
      %p61 = scmp.eq.s32.totalorder %s23, 1
      %p62 = por %p60, %p61
      %p64 = scmp.ne.s32.totalorder %s49, %s63
      %p65 = scmp.eq.s32.totalorder %s23, 0
      %p66 = por %p64, %p65
      %s67 = ssub.s32 %s17, %s24
      %p68 = scmp.eq.s32.totalorder %s67, 0
      %s70 = sadd.s32 %s69, 1
      %s71 = scalar_select %p68, %s69, %s70
      %p74 = pneg %p68
      %p75 = scmp.eq.s32.totalorder %s17, 1
      %p76 = por %p74, %p75
      %p77 = scmp.ne.s32.totalorder %s69, %s72
      %p78 = scmp.eq.s32.totalorder %s17, 0
      %p79 = por %p77, %p78
      %p80 = scmp.ne.s32.totalorder %s69, %s72
      %p81 = scmp.eq.s32.totalorder %s22, 1
      %p82 = por %p80, %p81
      %p83 = scmp.ne.s32.totalorder %s72, %s73
      %p84 = scmp.eq.s32.totalorder %s22, 0
      %p85 = por %p83, %p84
      %p86 = scmp.ne.s32.totalorder %s72, %s73
      %p87 = scmp.eq.s32.totalorder %s23, 1
      %p88 = por %p86, %p87
      %p90 = scmp.ne.s32.totalorder %s73, %s89
      %p91 = scmp.eq.s32.totalorder %s23, 0
      %p92 = por %p90, %p91
      %s93 = ssub.s32 %s17, %s24
      %p94 = scmp.eq.s32.totalorder %s93, 0
      %s96 = sadd.s32 %s95, 1
      %s97 = scalar_select %p94, %s95, %s96
      %p100 = pneg %p94
      %p101 = scmp.eq.s32.totalorder %s17, 1
      %p102 = por %p100, %p101
      %p103 = scmp.ne.s32.totalorder %s95, %s98
      %p104 = scmp.eq.s32.totalorder %s17, 0
      %p105 = por %p103, %p104
      %p106 = scmp.ne.s32.totalorder %s95, %s98
      %p107 = scmp.eq.s32.totalorder %s22, 1
      %p108 = por %p106, %p107
      %p109 = scmp.ne.s32.totalorder %s98, %s99
      %p110 = scmp.eq.s32.totalorder %s22, 0
      %p111 = por %p109, %p110
      %p112 = scmp.ne.s32.totalorder %s98, %s99
      %p113 = scmp.eq.s32.totalorder %s23, 1
      %p114 = por %p112, %p113
      %p116 = scmp.ne.s32.totalorder %s99, %s115
      %p117 = scmp.eq.s32.totalorder %s23, 0
      %p118 = por %p116, %p117
      %p119 = scmp.le.s32.totalorder 1, %s17
      %p120 = scmp.lt.s32.totalorder %s17, 3
      %p121 = pnand %p119, %p120
      %p122 = pneg %p121
      // Predicated region
      $region9: #{tpu_custom_call.1} parent=5 // pred_check
        _
      $region10: #{tpu_custom_call.1} parent=5 // pred_check_branch
        %124 = sbr.rel (%p121) target = $region12
      $region11: #{tpu_custom_call.1} parent=5 // pred_region
        %s125 = ssub.s32 %s17, 1
        // Predicated region
        $region13: #{tpu_custom_call.1} parent=11 // pred_check
          %p126 = pneg %p38
        $region14: #{tpu_custom_call.1} parent=11 // pred_check_branch
          %128 = sbr.rel (%p126) target = $region16
        $region15: #{tpu_custom_call.1} parent=11 // pred_region
          %s130 = ssub.s32 16, 16
          %131 = vsyncadd [#allocation6], %s130
          %134 = dma.hbm_to_smem %s0, 16, [#allocation3], [#allocation6]
        $region16: #{tpu_custom_call.1} parent=11 // pred_fallthru
          _
        // Predicated region
        $region17: #{tpu_custom_call.1} parent=11 // pred_check
          %p135 = pneg %p59
        $region18: #{tpu_custom_call.1} parent=11 // pred_check_branch
          %137 = sbr.rel (%p135) target = $region20
        $region19: #{tpu_custom_call.1} parent=11 // pred_region
          %s139 = ssub.s32 16, 16
          %140 = vsyncadd [#allocation7], %s139
          %s142 = sshll.u32 %s1, 4
          %s143 = int_to_ptr.vmem [resolvable:$true] %s142
          %145 = dma.vmem_to_smem %s143, 16, [#allocation8], [#allocation7]
        $region20: #{tpu_custom_call.1} parent=11 // pred_fallthru
          _
      $region12: #{tpu_custom_call.1} parent=5 // pred_fallthru
        _
      %p146 = scmp.lt.s32.totalorder %s17, 2
      // Predicated region
      $region21: #{tpu_custom_call.1} parent=5 // pred_check
        %p147 = pneg %p146
      $region22: #{tpu_custom_call.1} parent=5 // pred_check_branch
        %149 = sbr.rel (%p147) target = $region24
      $region23: #{tpu_custom_call.1} parent=5 // pred_region
        // Predicated region
        $region25: #{tpu_custom_call.1} parent=23 // pred_check
          %p150 = pneg %p79
        $region26: #{tpu_custom_call.1} parent=23 // pred_check_branch
          %152 = sbr.rel (%p150) target = $region28
        $region27: #{tpu_custom_call.1} parent=23 // pred_region
          %s153 = sand.u32 %s69, 1
          %s154 = scalar_lea.sflag [#allocation4], %s153
          %s155 = sand.u32 %s69, 1
          %s156 = smul.addr %s155, 64
          %s157 = scalar_lea.vmem [#allocation9], %s156
          %s159 = ssub.s32 1024, 1024
          %160 = vsyncadd %s154, %s159
          %s161 = smul.addr %s17, 8
          %s162 = smul.addr %s161, 128
          %s163 = scalar_lea.hbm %s2, %s162
          %s164 = sshll.u32 %s157, 4
          %s165 = int_to_ptr.vmem [resolvable:$true] %s164
          %170 = dma.hbm_to_vmem [thread:$0]  %s163, 1024, %s165, %s154, 128, 128, 8
        $region28: #{tpu_custom_call.1} parent=23 // pred_fallthru
          _
      $region24: #{tpu_custom_call.1} parent=5 // pred_fallthru
        _
      %p171 = scmp.le.s32.totalorder 1, %s17
      %p172 = scmp.lt.s32.totalorder %s17, 3
      %p173 = pnand %p171, %p172
      %p174 = pneg %p173
      // Predicated region
      $region29: #{tpu_custom_call.1} parent=5 // pred_check
        _
      $region30: #{tpu_custom_call.1} parent=5 // pred_check_branch
        %176 = sbr.rel (%p173) target = $region32
      $region31: #{tpu_custom_call.1} parent=5 // pred_region
        %s177 = ssub.s32 %s17, 1
        // Predicated region
        $region33: #{tpu_custom_call.1} parent=31 // pred_check
          %p178 = pneg %p38
        $region34: #{tpu_custom_call.1} parent=31 // pred_check_branch
          %180 = sbr.rel (%p178) target = $region36
        $region35: #{tpu_custom_call.1} parent=31 // pred_region
          %181 = dma.done [#allocation6], 16
        $region36: #{tpu_custom_call.1} parent=31 // pred_fallthru
          _
        // Predicated region
        $region37: #{tpu_custom_call.1} parent=31 // pred_check
          %p182 = pneg %p59
        $region38: #{tpu_custom_call.1} parent=31 // pred_check_branch
          %184 = sbr.rel (%p182) target = $region40
        $region39: #{tpu_custom_call.1} parent=31 // pred_region
          %185 = dma.done [#allocation7], 16
        $region40: #{tpu_custom_call.1} parent=31 // pred_fallthru
          _
        %s186 = sand.u32 %s72, 1
        %s187 = scalar_lea.sflag [#allocation4], %s186
        %s188 = sand.u32 %s72, 1
        %s189 = smul.addr %s188, 64
        %s190 = scalar_lea.vmem [#allocation9], %s189
        // Predicated region
        $region41: #{tpu_custom_call.1} parent=31 // pred_check
          %p191 = pneg %p85
        $region42: #{tpu_custom_call.1} parent=31 // pred_check_branch
          %193 = sbr.rel (%p191) target = $region44
        $region43: #{tpu_custom_call.1} parent=31 // pred_region
          %194 = dma.done %s187, 1024
        $region44: #{tpu_custom_call.1} parent=31 // pred_fallthru
          _
        %195 = sfence
        %p196 = pneg %p38
        %p197 = pneg %p35
        %p198 = pneg %p59
        %p199 = pneg %p56
        %s200 = sand.u32 %s72, 1
        %s201 = scalar_lea.sflag [#allocation4], %s200
        %s202 = sand.u32 %s72, 1
        %s203 = smul.addr %s202, 64
        %s204 = scalar_lea.vmem [#allocation9], %s203
        %p205 = pneg %p85
        %p206 = pneg %p82
        %p207 = pneg %p111
        %p208 = pneg %p108
        %s209 = sand.u32 %s98, 1
        %s210 = scalar_lea.sflag [#allocation5], %s209
        %s211 = sand.u32 %s98, 1
        %s212 = smul.addr %s211, 64
        %s213 = scalar_lea.vmem [#allocation10], %s212
        %214 = vst [vmem:[#allocation2] sm:$0x7] 0.0
        %215 = vst [vmem:[#allocation2 + $0x18] sm:$0x7] 0.0
        %216 = vst [vmem:[#allocation2 + $0x13] sm:$0x1f] 0.0
        %217 = vst [vmem:[#allocation2 + $0x2b] sm:$0x1f] 0.0
        %vm218 = vcmask 23552
        %219 = vst.msk [vmem:[#allocation2] sm:$0xff] %vm218, 0.0
        %220 = vst.msk [vmem:[#allocation2 + $0x8] sm:$0xff] %vm218, 0.0
        %221 = vst.msk [vmem:[#allocation2 + $0x10] sm:$0xff] %vm218, 0.0
        %222 = vst.msk [vmem:[#allocation2 + $0x18] sm:$0xff] %vm218, 0.0
        %223 = vst.msk [vmem:[#allocation2 + $0x20] sm:$0xff] %vm218, 0.0
        %224 = vst.msk [vmem:[#allocation2 + $0x28] sm:$0xff] %vm218, 0.0
        %vm225 = vcmask 179352
        %226 = vst.msk [vmem:[#allocation2] sm:$0xff] %vm225, 0.0
        %227 = vst.msk [vmem:[#allocation2 + $0x8] sm:$0xff] %vm225, 0.0
        %228 = vst.msk [vmem:[#allocation2 + $0x10] sm:$0xff] %vm225, 0.0
        %229 = vst.msk [vmem:[#allocation2 + $0x18] sm:$0xff] %vm225, 0.0
        %230 = vst.msk [vmem:[#allocation2 + $0x20] sm:$0xff] %vm225, 0.0
        %231 = vst.msk [vmem:[#allocation2 + $0x28] sm:$0xff] %vm225, 0.0
        %v232 = vld [vmem:[%s190] sm:$0xff]
        %v233 = vld [vmem:[%s190 + $0x8] sm:$0xff]
        loop: start=1, step=1, limit=4
        $region45: #{tpu_custom_call.1} parent=31 // loop_pre_header
          _
        $region46: #{tpu_custom_call.1} parent=31 // loop_header
          %s235 = sphi 1, %s239
          %p236 = scmp.ge.s32.totalorder %s235, 4
          %v240 = vphi %v232, %v248
          %v241 = vphi %v233, %v249
          %v242 = vphi %v232, %v250
          %v243 = vphi %v233, %v251
        $region47: #{tpu_custom_call.1} parent=31 // loop_header_branch
          %238 = sbr.rel (%p236) target = $region51
        $region48: #{tpu_custom_call.1} parent=31 // loop_body
          %s244 = smul.u32 %s235, 16
          %s245 = scalar_lea.vmem %s190, %s244 [#allocation9]
          %v246 = vld [vmem:[%s245] sm:$0xff]
          %v247 = vld [vmem:[%s245 + $0x8] sm:$0xff]
          %v248 = vmax.f32 %v240, %v246
          %v249 = vmax.f32 %v241, %v247
          %v250 = vadd.f32 %v242, %v246
          %v251 = vadd.f32 %v243, %v247
        $region49: #{tpu_custom_call.1} parent=31 // loop_footer
          %s239 = sadd.s32 1, %s235
        $region50: #{tpu_custom_call.1} parent=31 // loop_footer_branch
          %234 = sbr.rel target = $region46
        $region51: #{tpu_custom_call.1} parent=31 // loop_exit
          _
        %254 = vrot.lane.b32.xlu0 %v240, 3
        %v255 = vpop.permute.xlu0 %254
        %256 = vrot.lane.b32.xlu0 %v241, 3
        %v257 = vpop.permute.xlu0 %256
        %vm260 = vcmask 154648
        %261 = vst.msk [vmem:[#allocation2 + $0x3] sm:$0xff] %vm260, %v255
        %262 = vst.msk [vmem:[#allocation2 + $0xb] sm:$0xff] %vm260, %v257
        %v263 = vmul.f32 %v242, 0.25
        %v264 = vmul.f32 %v243, 0.25
        %267 = vrot.lane.b32.xlu0 %v263, 3
        %v268 = vpop.permute.xlu0 %267
        %269 = vrot.lane.b32.xlu0 %v264, 3
        %v270 = vpop.permute.xlu0 %269
        %s273 = scalar_lea.vmem [#allocation2], 24
        %274 = vst.msk [vmem:[%s273 + $0x3] sm:$0xff] %vm260, %v268
        %275 = vst.msk [vmem:[%s273 + $0xb] sm:$0xff] %vm260, %v270
        %s276 = sld [smem:[#allocation3]]
        %s277 = sld [smem:[#allocation3 + $0x1]]
        %s278 = sld [smem:[#allocation3 + $0x2]]
        %s279 = sld [smem:[#allocation3 + $0x3]]
        %s280 = sld [smem:[#allocation3 + $0x4]]
        %s281 = sld [smem:[#allocation3 + $0x5]]
        %s282 = sld [smem:[#allocation3 + $0x6]]
        %s283 = sld [smem:[#allocation3 + $0x7]]
        %s284 = sld [smem:[#allocation3 + $0x8]]
        %s285 = sld [smem:[#allocation3 + $0x9]]
        %s286 = sld [smem:[#allocation3 + $0xa]]
        %s287 = sld [smem:[#allocation3 + $0xb]]
        %s288 = sld [smem:[#allocation3 + $0xc]]
        %s289 = sld [smem:[#allocation3 + $0xd]]
        %s290 = sld [smem:[#allocation3 + $0xe]]
        %s291 = sld [smem:[#allocation3 + $0xf]]
        %s292 = sld [smem:[#allocation3 + $0x10]]
        %s293 = sld [smem:[#allocation3 + $0x11]]
        %s294 = sld [smem:[#allocation3 + $0x12]]
        %s295 = sld [smem:[#allocation3 + $0x13]]
        %s296 = sld [smem:[#allocation3 + $0x14]]
        %s297 = sld [smem:[#allocation3 + $0x15]]
        %s298 = sld [smem:[#allocation3 + $0x16]]
        %s299 = sld [smem:[#allocation3 + $0x17]]
        %s300 = sld [smem:[#allocation3 + $0x18]]
        %s301 = sld [smem:[#allocation3 + $0x19]]
        %s302 = sld [smem:[#allocation3 + $0x1a]]
        %s303 = sld [smem:[#allocation3 + $0x1b]]
        %s304 = sld [smem:[#allocation3 + $0x1c]]
        %s305 = sld [smem:[#allocation3 + $0x1d]]
        %s306 = sld [smem:[#allocation3 + $0x1e]]
        %s307 = sld [smem:[#allocation3 + $0x1f]]
        %s308 = sld [smem:[#allocation3 + $0x20]]
        %s309 = sld [smem:[#allocation3 + $0x21]]
        %s310 = sld [smem:[#allocation3 + $0x22]]
        %s311 = sld [smem:[#allocation3 + $0x23]]
        %s312 = sld [smem:[#allocation3 + $0x24]]
        %s313 = sld [smem:[#allocation3 + $0x25]]
        %s314 = sld [smem:[#allocation3 + $0x26]]
        %s315 = sld [smem:[#allocation3 + $0x27]]
        %s316 = sld [smem:[#allocation3 + $0x28]]
        %s317 = sld [smem:[#allocation3 + $0x29]]
        %s318 = sld [smem:[#allocation3 + $0x2a]]
        %s319 = sld [smem:[#allocation3 + $0x2b]]
        %s320 = sld [smem:[#allocation3 + $0x2c]]
        %s321 = sld [smem:[#allocation3 + $0x2d]]
        %s322 = sld [smem:[#allocation3 + $0x2e]]
        %s323 = sld [smem:[#allocation3 + $0x2f]]
        %s324 = sld [smem:[#allocation3 + $0x30]]
        %s325 = sld [smem:[#allocation3 + $0x31]]
        %s326 = sld [smem:[#allocation3 + $0x32]]
        %s327 = sld [smem:[#allocation3 + $0x33]]
        %s328 = sld [smem:[#allocation3 + $0x34]]
        %s329 = sld [smem:[#allocation3 + $0x35]]
        %s330 = sld [smem:[#allocation3 + $0x36]]
        %s331 = sld [smem:[#allocation3 + $0x37]]
        %s332 = sld [smem:[#allocation3 + $0x38]]
        %s333 = sld [smem:[#allocation3 + $0x39]]
        %s334 = sld [smem:[#allocation3 + $0x3a]]
        %s335 = sld [smem:[#allocation3 + $0x3b]]
        %s336 = sld [smem:[#allocation3 + $0x3c]]
        %s337 = sld [smem:[#allocation3 + $0x3d]]
        %s338 = sld [smem:[#allocation3 + $0x3e]]
        %s339 = sld [smem:[#allocation3 + $0x3f]]
        %s340 = sld [smem:[#allocation3 + $0x40]]
        %s341 = sld [smem:[#allocation3 + $0x41]]
        %s342 = sld [smem:[#allocation3 + $0x42]]
        %s343 = sld [smem:[#allocation3 + $0x43]]
        %s344 = sld [smem:[#allocation3 + $0x44]]
        %s345 = sld [smem:[#allocation3 + $0x45]]
        %s346 = sld [smem:[#allocation3 + $0x46]]
        %s347 = sld [smem:[#allocation3 + $0x47]]
        %s348 = sld [smem:[#allocation3 + $0x48]]
        %s349 = sld [smem:[#allocation3 + $0x49]]
        %s350 = sld [smem:[#allocation3 + $0x4a]]
        %s351 = sld [smem:[#allocation3 + $0x4b]]
        %s352 = sld [smem:[#allocation3 + $0x4c]]
        %s353 = sld [smem:[#allocation3 + $0x4d]]
        %s354 = sld [smem:[#allocation3 + $0x4e]]
        %s355 = sld [smem:[#allocation3 + $0x4f]]
        %s356 = sld [smem:[#allocation3 + $0x50]]
        %s357 = sld [smem:[#allocation3 + $0x51]]
        %s358 = sld [smem:[#allocation3 + $0x52]]
        %s359 = sld [smem:[#allocation3 + $0x53]]
        %s360 = sld [smem:[#allocation3 + $0x54]]
        %s361 = sld [smem:[#allocation3 + $0x55]]
        %s362 = sld [smem:[#allocation3 + $0x56]]
        %s363 = sld [smem:[#allocation3 + $0x57]]
        %s364 = sld [smem:[#allocation3 + $0x58]]
        %s365 = sld [smem:[#allocation3 + $0x59]]
        %s366 = sld [smem:[#allocation3 + $0x5a]]
        %s367 = sld [smem:[#allocation3 + $0x5b]]
        %s368 = sld [smem:[#allocation3 + $0x5c]]
        %s369 = sld [smem:[#allocation3 + $0x5d]]
        %s370 = sld [smem:[#allocation3 + $0x5e]]
        %s371 = sld [smem:[#allocation3 + $0x5f]]
        %s372 = sld [smem:[#allocation3 + $0x60]]
        %s373 = sld [smem:[#allocation3 + $0x61]]
        %v374 = vld [vmem:[#allocation2] sm:$0xff]
        %v375 = vld [vmem:[#allocation2 + $0x8] sm:$0xff]
        %v376 = vld [vmem:[#allocation2 + $0x10] sm:$0xff]
        %v377 = vstv %s276
        %v378 = vmul.f32 %v377, %v374
        %v379 = vmul.f32 %v377, %v375
        %v380 = vadd.f32 %v378, 0.0
        %v381 = vadd.f32 %v379, 0.0
        %v382 = vstv %s283
        %v383 = vmul.f32 %v382, %v374
        %v384 = vmul.f32 %v382, %v375
        %v385 = vmul.f32 %v382, %v376
        %vm389 = vcmask 1046528
        %v390 = vrot.slane %v383, 1
        %v391 = vrot.slane %v384, 1
        %v392 = vsel %vm389, %v390, %v391
        %v393 = vrot.slane %v385, 1
        %v394 = vsel %vm389, %v391, %v393
        %v397 = vadd.f32 %v380, %v392
        %v398 = vadd.f32 %v381, %v394
        %v399 = vstv %s290
        %v400 = vmul.f32 %v399, %v374
        %v401 = vmul.f32 %v399, %v375
        %v402 = vmul.f32 %v399, %v376
        %vm406 = vcmask 1045504
        %v407 = vrot.slane %v400, 2
        %v408 = vrot.slane %v401, 2
        %v409 = vsel %vm406, %v407, %v408
        %v410 = vrot.slane %v402, 2
        %v411 = vsel %vm406, %v408, %v410
        %v414 = vadd.f32 %v397, %v409
        %v415 = vadd.f32 %v398, %v411
        %v416 = vstv %s297
        %v417 = vmul.f32 %v416, %v374
        %v418 = vmul.f32 %v416, %v375
        %v419 = vmul.f32 %v416, %v376
        %vm423 = vcmask 1044480
        %v424 = vrot.slane %v417, 3
        %v425 = vrot.slane %v418, 3
        %v426 = vsel %vm423, %v424, %v425
        %v427 = vrot.slane %v419, 3
        %v428 = vsel %vm423, %v425, %v427
        %v431 = vadd.f32 %v414, %v426
        %v432 = vadd.f32 %v415, %v428
        %v433 = vstv %s304
        %v434 = vmul.f32 %v433, %v374
        %v435 = vmul.f32 %v433, %v375
        %v436 = vmul.f32 %v433, %v376
        %vm440 = vcmask 1043456
        %v441 = vrot.slane %v434, 4
        %v442 = vrot.slane %v435, 4
        %v443 = vsel %vm440, %v441, %v442
        %v444 = vrot.slane %v436, 4
        %v445 = vsel %vm440, %v442, %v444
        %v448 = vadd.f32 %v431, %v443
        %v449 = vadd.f32 %v432, %v445
        %v450 = vstv %s311
        %v451 = vmul.f32 %v450, %v374
        %v452 = vmul.f32 %v450, %v375
        %v453 = vmul.f32 %v450, %v376
        %vm457 = vcmask 1042432
        %v458 = vrot.slane %v451, 5
        %v459 = vrot.slane %v452, 5
        %v460 = vsel %vm457, %v458, %v459
        %v461 = vrot.slane %v453, 5
        %v462 = vsel %vm457, %v459, %v461
        %v465 = vadd.f32 %v448, %v460
        %v466 = vadd.f32 %v449, %v462
        %v467 = vstv %s318
        %v468 = vmul.f32 %v467, %v374
        %v469 = vmul.f32 %v467, %v375
        %v470 = vmul.f32 %v467, %v376
        %vm474 = vcmask 1041408
        %v475 = vrot.slane %v468, 6
        %v476 = vrot.slane %v469, 6
        %v477 = vsel %vm474, %v475, %v476
        %v478 = vrot.slane %v470, 6
        %v479 = vsel %vm474, %v476, %v478
        %v482 = vadd.f32 %v465, %v477
        %v483 = vadd.f32 %v466, %v479
        %v484 = vstv %s277
        %v485 = vmul.f32 %v484, %v374
        %v486 = vmul.f32 %v484, %v375
        %489 = vrot.lane.b32.xlu0 %v485, 127
        %v490 = vpop.permute.xlu0 %489
        %491 = vrot.lane.b32.xlu0 %v486, 127
        %v492 = vpop.permute.xlu0 %491
        %v495 = vadd.f32 %v482, %v490
        %v496 = vadd.f32 %v483, %v492
        %v497 = vstv %s284
        %v498 = vmul.f32 %v497, %v374
        %v499 = vmul.f32 %v497, %v375
        %v500 = vmul.f32 %v497, %v376
        %v504 = vrot.slane %v498, 1
        %v505 = vrot.slane %v499, 1
        %v506 = vsel %vm389, %v504, %v505
        %v507 = vrot.slane %v500, 1
        %v508 = vsel %vm389, %v505, %v507
        %509 = vrot.lane.b32.xlu0 %v506, 127
        %v510 = vpop.permute.xlu0 %509
        %511 = vrot.lane.b32.xlu0 %v508, 127
        %v512 = vpop.permute.xlu0 %511
        %v515 = vadd.f32 %v495, %v510
        %v516 = vadd.f32 %v496, %v512
        %v517 = vstv %s291
        %v518 = vmul.f32 %v517, %v374
        %v519 = vmul.f32 %v517, %v375
        %v520 = vmul.f32 %v517, %v376
        %v524 = vrot.slane %v518, 2
        %v525 = vrot.slane %v519, 2
        %v526 = vsel %vm406, %v524, %v525
        %v527 = vrot.slane %v520, 2
        %v528 = vsel %vm406, %v525, %v527
        %529 = vrot.lane.b32.xlu0 %v526, 127
        %v530 = vpop.permute.xlu0 %529
        %531 = vrot.lane.b32.xlu0 %v528, 127
        %v532 = vpop.permute.xlu0 %531
        %v535 = vadd.f32 %v515, %v530
        %v536 = vadd.f32 %v516, %v532
        %v537 = vstv %s298
        %v538 = vmul.f32 %v537, %v374
        %v539 = vmul.f32 %v537, %v375
        %v540 = vmul.f32 %v537, %v376
        %v544 = vrot.slane %v538, 3
        %v545 = vrot.slane %v539, 3
        %v546 = vsel %vm423, %v544, %v545
        %v547 = vrot.slane %v540, 3
        %v548 = vsel %vm423, %v545, %v547
        %549 = vrot.lane.b32.xlu0 %v546, 127
        %v550 = vpop.permute.xlu0 %549
        %551 = vrot.lane.b32.xlu0 %v548, 127
        %v552 = vpop.permute.xlu0 %551
        %v555 = vadd.f32 %v535, %v550
        %v556 = vadd.f32 %v536, %v552
        %v557 = vstv %s305
        %v558 = vmul.f32 %v557, %v374
        %v559 = vmul.f32 %v557, %v375
        %v560 = vmul.f32 %v557, %v376
        %v564 = vrot.slane %v558, 4
        %v565 = vrot.slane %v559, 4
        %v566 = vsel %vm440, %v564, %v565
        %v567 = vrot.slane %v560, 4
        %v568 = vsel %vm440, %v565, %v567
        %569 = vrot.lane.b32.xlu0 %v566, 127
        %v570 = vpop.permute.xlu0 %569
        %571 = vrot.lane.b32.xlu0 %v568, 127
        %v572 = vpop.permute.xlu0 %571
        %v575 = vadd.f32 %v555, %v570
        %v576 = vadd.f32 %v556, %v572
        %v577 = vstv %s312
        %v578 = vmul.f32 %v577, %v374
        %v579 = vmul.f32 %v577, %v375
        %v580 = vmul.f32 %v577, %v376
        %v584 = vrot.slane %v578, 5
        %v585 = vrot.slane %v579, 5
        %v586 = vsel %vm457, %v584, %v585
        %v587 = vrot.slane %v580, 5
        %v588 = vsel %vm457, %v585, %v587
        %589 = vrot.lane.b32.xlu0 %v586, 127
        %v590 = vpop.permute.xlu0 %589
        %591 = vrot.lane.b32.xlu0 %v588, 127
        %v592 = vpop.permute.xlu0 %591
        %v595 = vadd.f32 %v575, %v590
        %v596 = vadd.f32 %v576, %v592
        %v597 = vstv %s319
        %v598 = vmul.f32 %v597, %v374
        %v599 = vmul.f32 %v597, %v375
        %v600 = vmul.f32 %v597, %v376
        %v604 = vrot.slane %v598, 6
        %v605 = vrot.slane %v599, 6
        %v606 = vsel %vm474, %v604, %v605
        %v607 = vrot.slane %v600, 6
        %v608 = vsel %vm474, %v605, %v607
        %609 = vrot.lane.b32.xlu0 %v606, 127
        %v610 = vpop.permute.xlu0 %609
        %611 = vrot.lane.b32.xlu0 %v608, 127
        %v612 = vpop.permute.xlu0 %611
        %v615 = vadd.f32 %v595, %v610
        %v616 = vadd.f32 %v596, %v612
        %v617 = vstv %s278
        %v618 = vmul.f32 %v617, %v374
        %v619 = vmul.f32 %v617, %v375
        %622 = vrot.lane.b32.xlu0 %v618, 126
        %v623 = vpop.permute.xlu0 %622
        %624 = vrot.lane.b32.xlu0 %v619, 126
        %v625 = vpop.permute.xlu0 %624
        %v628 = vadd.f32 %v615, %v623
        %v629 = vadd.f32 %v616, %v625
        %v630 = vstv %s285
        %v631 = vmul.f32 %v630, %v374
        %v632 = vmul.f32 %v630, %v375
        %v633 = vmul.f32 %v630, %v376
        %v637 = vrot.slane %v631, 1
        %v638 = vrot.slane %v632, 1
        %v639 = vsel %vm389, %v637, %v638
        %v640 = vrot.slane %v633, 1
        %v641 = vsel %vm389, %v638, %v640
        %642 = vrot.lane.b32.xlu0 %v639, 126
        %v643 = vpop.permute.xlu0 %642
        %644 = vrot.lane.b32.xlu0 %v641, 126
        %v645 = vpop.permute.xlu0 %644
        %v648 = vadd.f32 %v628, %v643
        %v649 = vadd.f32 %v629, %v645
        %v650 = vstv %s292
        %v651 = vmul.f32 %v650, %v374
        %v652 = vmul.f32 %v650, %v375
        %v653 = vmul.f32 %v650, %v376
        %v657 = vrot.slane %v651, 2
        %v658 = vrot.slane %v652, 2
        %v659 = vsel %vm406, %v657, %v658
        %v660 = vrot.slane %v653, 2
        %v661 = vsel %vm406, %v658, %v660
        %662 = vrot.lane.b32.xlu0 %v659, 126
        %v663 = vpop.permute.xlu0 %662
        %664 = vrot.lane.b32.xlu0 %v661, 126
        %v665 = vpop.permute.xlu0 %664
        %v668 = vadd.f32 %v648, %v663
        %v669 = vadd.f32 %v649, %v665
        %v670 = vstv %s299
        %v671 = vmul.f32 %v670, %v374
        %v672 = vmul.f32 %v670, %v375
        %v673 = vmul.f32 %v670, %v376
        %v677 = vrot.slane %v671, 3
        %v678 = vrot.slane %v672, 3
        %v679 = vsel %vm423, %v677, %v678
        %v680 = vrot.slane %v673, 3
        %v681 = vsel %vm423, %v678, %v680
        %682 = vrot.lane.b32.xlu0 %v679, 126
        %v683 = vpop.permute.xlu0 %682
        %684 = vrot.lane.b32.xlu0 %v681, 126
        %v685 = vpop.permute.xlu0 %684
        %v688 = vadd.f32 %v668, %v683
        %v689 = vadd.f32 %v669, %v685
        %v690 = vstv %s306
        %v691 = vmul.f32 %v690, %v374
        %v692 = vmul.f32 %v690, %v375
        %v693 = vmul.f32 %v690, %v376
        %v697 = vrot.slane %v691, 4
        %v698 = vrot.slane %v692, 4
        %v699 = vsel %vm440, %v697, %v698
        %v700 = vrot.slane %v693, 4
        %v701 = vsel %vm440, %v698, %v700
        %702 = vrot.lane.b32.xlu0 %v699, 126
        %v703 = vpop.permute.xlu0 %702
        %704 = vrot.lane.b32.xlu0 %v701, 126
        %v705 = vpop.permute.xlu0 %704
        %v708 = vadd.f32 %v688, %v703
        %v709 = vadd.f32 %v689, %v705
        %v710 = vstv %s313
        %v711 = vmul.f32 %v710, %v374
        %v712 = vmul.f32 %v710, %v375
        %v713 = vmul.f32 %v710, %v376
        %v717 = vrot.slane %v711, 5
        %v718 = vrot.slane %v712, 5
        %v719 = vsel %vm457, %v717, %v718
        %v720 = vrot.slane %v713, 5
        %v721 = vsel %vm457, %v718, %v720
        %722 = vrot.lane.b32.xlu0 %v719, 126
        %v723 = vpop.permute.xlu0 %722
        %724 = vrot.lane.b32.xlu0 %v721, 126
        %v725 = vpop.permute.xlu0 %724
        %v728 = vadd.f32 %v708, %v723
        %v729 = vadd.f32 %v709, %v725
        %v730 = vstv %s320
        %v731 = vmul.f32 %v730, %v374
        %v732 = vmul.f32 %v730, %v375
        %v733 = vmul.f32 %v730, %v376
        %v737 = vrot.slane %v731, 6
        %v738 = vrot.slane %v732, 6
        %v739 = vsel %vm474, %v737, %v738
        %v740 = vrot.slane %v733, 6
        %v741 = vsel %vm474, %v738, %v740
        %742 = vrot.lane.b32.xlu0 %v739, 126
        %v743 = vpop.permute.xlu0 %742
        %744 = vrot.lane.b32.xlu0 %v741, 126
        %v745 = vpop.permute.xlu0 %744
        %v748 = vadd.f32 %v728, %v743
        %v749 = vadd.f32 %v729, %v745
        %v750 = vstv %s279
        %v751 = vmul.f32 %v750, %v374
        %v752 = vmul.f32 %v750, %v375
        %755 = vrot.lane.b32.xlu0 %v751, 125
        %v756 = vpop.permute.xlu0 %755
        %757 = vrot.lane.b32.xlu0 %v752, 125
        %v758 = vpop.permute.xlu0 %757
        %v761 = vadd.f32 %v748, %v756
        %v762 = vadd.f32 %v749, %v758
        %v763 = vstv %s286
        %v764 = vmul.f32 %v763, %v374
        %v765 = vmul.f32 %v763, %v375
        %v766 = vmul.f32 %v763, %v376
        %v770 = vrot.slane %v764, 1
        %v771 = vrot.slane %v765, 1
        %v772 = vsel %vm389, %v770, %v771
        %v773 = vrot.slane %v766, 1
        %v774 = vsel %vm389, %v771, %v773
        %775 = vrot.lane.b32.xlu0 %v772, 125
        %v776 = vpop.permute.xlu0 %775
        %777 = vrot.lane.b32.xlu0 %v774, 125
        %v778 = vpop.permute.xlu0 %777
        %v781 = vadd.f32 %v761, %v776
        %v782 = vadd.f32 %v762, %v778
        %v783 = vstv %s293
        %v784 = vmul.f32 %v783, %v374
        %v785 = vmul.f32 %v783, %v375
        %v786 = vmul.f32 %v783, %v376
        %v790 = vrot.slane %v784, 2
        %v791 = vrot.slane %v785, 2
        %v792 = vsel %vm406, %v790, %v791
        %v793 = vrot.slane %v786, 2
        %v794 = vsel %vm406, %v791, %v793
        %795 = vrot.lane.b32.xlu0 %v792, 125
        %v796 = vpop.permute.xlu0 %795
        %797 = vrot.lane.b32.xlu0 %v794, 125
        %v798 = vpop.permute.xlu0 %797
        %v801 = vadd.f32 %v781, %v796
        %v802 = vadd.f32 %v782, %v798
        %v803 = vstv %s300
        %v804 = vmul.f32 %v803, %v374
        %v805 = vmul.f32 %v803, %v375
        %v806 = vmul.f32 %v803, %v376
        %v810 = vrot.slane %v804, 3
        %v811 = vrot.slane %v805, 3
        %v812 = vsel %vm423, %v810, %v811
        %v813 = vrot.slane %v806, 3
        %v814 = vsel %vm423, %v811, %v813
        %815 = vrot.lane.b32.xlu0 %v812, 125
        %v816 = vpop.permute.xlu0 %815
        %817 = vrot.lane.b32.xlu0 %v814, 125
        %v818 = vpop.permute.xlu0 %817
        %v821 = vadd.f32 %v801, %v816
        %v822 = vadd.f32 %v802, %v818
        %v823 = vstv %s307
        %v824 = vmul.f32 %v823, %v374
        %v825 = vmul.f32 %v823, %v375
        %v826 = vmul.f32 %v823, %v376
        %v830 = vrot.slane %v824, 4
        %v831 = vrot.slane %v825, 4
        %v832 = vsel %vm440, %v830, %v831
        %v833 = vrot.slane %v826, 4
        %v834 = vsel %vm440, %v831, %v833
        %835 = vrot.lane.b32.xlu0 %v832, 125
        %v836 = vpop.permute.xlu0 %835
        %837 = vrot.lane.b32.xlu0 %v834, 125
        %v838 = vpop.permute.xlu0 %837
        %v841 = vadd.f32 %v821, %v836
        %v842 = vadd.f32 %v822, %v838
        %v843 = vstv %s314
        %v844 = vmul.f32 %v843, %v374
        %v845 = vmul.f32 %v843, %v375
        %v846 = vmul.f32 %v843, %v376
        %v850 = vrot.slane %v844, 5
        %v851 = vrot.slane %v845, 5
        %v852 = vsel %vm457, %v850, %v851
        %v853 = vrot.slane %v846, 5
        %v854 = vsel %vm457, %v851, %v853
        %855 = vrot.lane.b32.xlu0 %v852, 125
        %v856 = vpop.permute.xlu0 %855
        %857 = vrot.lane.b32.xlu0 %v854, 125
        %v858 = vpop.permute.xlu0 %857
        %v861 = vadd.f32 %v841, %v856
        %v862 = vadd.f32 %v842, %v858
        %v863 = vstv %s321
        %v864 = vmul.f32 %v863, %v374
        %v865 = vmul.f32 %v863, %v375
        %v866 = vmul.f32 %v863, %v376
        %v870 = vrot.slane %v864, 6
        %v871 = vrot.slane %v865, 6
        %v872 = vsel %vm474, %v870, %v871
        %v873 = vrot.slane %v866, 6
        %v874 = vsel %vm474, %v871, %v873
        %875 = vrot.lane.b32.xlu0 %v872, 125
        %v876 = vpop.permute.xlu0 %875
        %877 = vrot.lane.b32.xlu0 %v874, 125
        %v878 = vpop.permute.xlu0 %877
        %v881 = vadd.f32 %v861, %v876
        %v882 = vadd.f32 %v862, %v878
        %v883 = vstv %s280
        %v884 = vmul.f32 %v883, %v374
        %v885 = vmul.f32 %v883, %v375
        %888 = vrot.lane.b32.xlu0 %v884, 124
        %v889 = vpop.permute.xlu0 %888
        %890 = vrot.lane.b32.xlu0 %v885, 124
        %v891 = vpop.permute.xlu0 %890
        %v894 = vadd.f32 %v881, %v889
        %v895 = vadd.f32 %v882, %v891
        %v896 = vstv %s287
        %v897 = vmul.f32 %v896, %v374
        %v898 = vmul.f32 %v896, %v375
        %v899 = vmul.f32 %v896, %v376
        %v903 = vrot.slane %v897, 1
        %v904 = vrot.slane %v898, 1
        %v905 = vsel %vm389, %v903, %v904
        %v906 = vrot.slane %v899, 1
        %v907 = vsel %vm389, %v904, %v906
        %908 = vrot.lane.b32.xlu0 %v905, 124
        %v909 = vpop.permute.xlu0 %908
        %910 = vrot.lane.b32.xlu0 %v907, 124
        %v911 = vpop.permute.xlu0 %910
        %v914 = vadd.f32 %v894, %v909
        %v915 = vadd.f32 %v895, %v911
        %v916 = vstv %s294
        %v917 = vmul.f32 %v916, %v374
        %v918 = vmul.f32 %v916, %v375
        %v919 = vmul.f32 %v916, %v376
        %v923 = vrot.slane %v917, 2
        %v924 = vrot.slane %v918, 2
        %v925 = vsel %vm406, %v923, %v924
        %v926 = vrot.slane %v919, 2
        %v927 = vsel %vm406, %v924, %v926
        %928 = vrot.lane.b32.xlu0 %v925, 124
        %v929 = vpop.permute.xlu0 %928
        %930 = vrot.lane.b32.xlu0 %v927, 124
        %v931 = vpop.permute.xlu0 %930
        %v934 = vadd.f32 %v914, %v929
        %v935 = vadd.f32 %v915, %v931
        %v936 = vstv %s301
        %v937 = vmul.f32 %v936, %v374
        %v938 = vmul.f32 %v936, %v375
        %v939 = vmul.f32 %v936, %v376
        %v943 = vrot.slane %v937, 3
        %v944 = vrot.slane %v938, 3
        %v945 = vsel %vm423, %v943, %v944
        %v946 = vrot.slane %v939, 3
        %v947 = vsel %vm423, %v944, %v946
        %948 = vrot.lane.b32.xlu0 %v945, 124
        %v949 = vpop.permute.xlu0 %948
        %950 = vrot.lane.b32.xlu0 %v947, 124
        %v951 = vpop.permute.xlu0 %950
        %v954 = vadd.f32 %v934, %v949
        %v955 = vadd.f32 %v935, %v951
        %v956 = vstv %s308
        %v957 = vmul.f32 %v956, %v374
        %v958 = vmul.f32 %v956, %v375
        %v959 = vmul.f32 %v956, %v376
        %v963 = vrot.slane %v957, 4
        %v964 = vrot.slane %v958, 4
        %v965 = vsel %vm440, %v963, %v964
        %v966 = vrot.slane %v959, 4
        %v967 = vsel %vm440, %v964, %v966
        %968 = vrot.lane.b32.xlu0 %v965, 124
        %v969 = vpop.permute.xlu0 %968
        %970 = vrot.lane.b32.xlu0 %v967, 124
        %v971 = vpop.permute.xlu0 %970
        %v974 = vadd.f32 %v954, %v969
        %v975 = vadd.f32 %v955, %v971
        %v976 = vstv %s315
        %v977 = vmul.f32 %v976, %v374
        %v978 = vmul.f32 %v976, %v375
        %v979 = vmul.f32 %v976, %v376
        %v983 = vrot.slane %v977, 5
        %v984 = vrot.slane %v978, 5
        %v985 = vsel %vm457, %v983, %v984
        %v986 = vrot.slane %v979, 5
        %v987 = vsel %vm457, %v984, %v986
        %988 = vrot.lane.b32.xlu0 %v985, 124
        %v989 = vpop.permute.xlu0 %988
        %990 = vrot.lane.b32.xlu0 %v987, 124
        %v991 = vpop.permute.xlu0 %990
        %v994 = vadd.f32 %v974, %v989
        %v995 = vadd.f32 %v975, %v991
        %v996 = vstv %s322
        %v997 = vmul.f32 %v996, %v374
        %v998 = vmul.f32 %v996, %v375
        %v999 = vmul.f32 %v996, %v376
        %v1003 = vrot.slane %v997, 6
        %v1004 = vrot.slane %v998, 6
        %v1005 = vsel %vm474, %v1003, %v1004
        %v1006 = vrot.slane %v999, 6
        %v1007 = vsel %vm474, %v1004, %v1006
        %1008 = vrot.lane.b32.xlu0 %v1005, 124
        %v1009 = vpop.permute.xlu0 %1008
        %1010 = vrot.lane.b32.xlu0 %v1007, 124
        %v1011 = vpop.permute.xlu0 %1010
        %v1014 = vadd.f32 %v994, %v1009
        %v1015 = vadd.f32 %v995, %v1011
        %v1016 = vstv %s281
        %v1017 = vmul.f32 %v1016, %v374
        %v1018 = vmul.f32 %v1016, %v375
        %1021 = vrot.lane.b32.xlu0 %v1017, 123
        %v1022 = vpop.permute.xlu0 %1021
        %1023 = vrot.lane.b32.xlu0 %v1018, 123
        %v1024 = vpop.permute.xlu0 %1023
        %v1027 = vadd.f32 %v1014, %v1022
        %v1028 = vadd.f32 %v1015, %v1024
        %v1029 = vstv %s288
        %v1030 = vmul.f32 %v1029, %v374
        %v1031 = vmul.f32 %v1029, %v375
        %v1032 = vmul.f32 %v1029, %v376
        %v1036 = vrot.slane %v1030, 1
        %v1037 = vrot.slane %v1031, 1
        %v1038 = vsel %vm389, %v1036, %v1037
        %v1039 = vrot.slane %v1032, 1
        %v1040 = vsel %vm389, %v1037, %v1039
        %1041 = vrot.lane.b32.xlu0 %v1038, 123
        %v1042 = vpop.permute.xlu0 %1041
        %1043 = vrot.lane.b32.xlu0 %v1040, 123
        %v1044 = vpop.permute.xlu0 %1043
        %v1047 = vadd.f32 %v1027, %v1042
        %v1048 = vadd.f32 %v1028, %v1044
        %v1049 = vstv %s295
        %v1050 = vmul.f32 %v1049, %v374
        %v1051 = vmul.f32 %v1049, %v375
        %v1052 = vmul.f32 %v1049, %v376
        %v1056 = vrot.slane %v1050, 2
        %v1057 = vrot.slane %v1051, 2
        %v1058 = vsel %vm406, %v1056, %v1057
        %v1059 = vrot.slane %v1052, 2
        %v1060 = vsel %vm406, %v1057, %v1059
        %1061 = vrot.lane.b32.xlu0 %v1058, 123
        %v1062 = vpop.permute.xlu0 %1061
        %1063 = vrot.lane.b32.xlu0 %v1060, 123
        %v1064 = vpop.permute.xlu0 %1063
        %v1067 = vadd.f32 %v1047, %v1062
        %v1068 = vadd.f32 %v1048, %v1064
        %v1069 = vstv %s302
        %v1070 = vmul.f32 %v1069, %v374
        %v1071 = vmul.f32 %v1069, %v375
        %v1072 = vmul.f32 %v1069, %v376
        %v1076 = vrot.slane %v1070, 3
        %v1077 = vrot.slane %v1071, 3
        %v1078 = vsel %vm423, %v1076, %v1077
        %v1079 = vrot.slane %v1072, 3
        %v1080 = vsel %vm423, %v1077, %v1079
        %1081 = vrot.lane.b32.xlu0 %v1078, 123
        %v1082 = vpop.permute.xlu0 %1081
        %1083 = vrot.lane.b32.xlu0 %v1080, 123
        %v1084 = vpop.permute.xlu0 %1083
        %v1087 = vadd.f32 %v1067, %v1082
        %v1088 = vadd.f32 %v1068, %v1084
        %v1089 = vstv %s309
        %v1090 = vmul.f32 %v1089, %v374
        %v1091 = vmul.f32 %v1089, %v375
        %v1092 = vmul.f32 %v1089, %v376
        %v1096 = vrot.slane %v1090, 4
        %v1097 = vrot.slane %v1091, 4
        %v1098 = vsel %vm440, %v1096, %v1097
        %v1099 = vrot.slane %v1092, 4
        %v1100 = vsel %vm440, %v1097, %v1099
        %1101 = vrot.lane.b32.xlu0 %v1098, 123
        %v1102 = vpop.permute.xlu0 %1101
        %1103 = vrot.lane.b32.xlu0 %v1100, 123
        %v1104 = vpop.permute.xlu0 %1103
        %v1107 = vadd.f32 %v1087, %v1102
        %v1108 = vadd.f32 %v1088, %v1104
        %v1109 = vstv %s316
        %v1110 = vmul.f32 %v1109, %v374
        %v1111 = vmul.f32 %v1109, %v375
        %v1112 = vmul.f32 %v1109, %v376
        %v1116 = vrot.slane %v1110, 5
        %v1117 = vrot.slane %v1111, 5
        %v1118 = vsel %vm457, %v1116, %v1117
        %v1119 = vrot.slane %v1112, 5
        %v1120 = vsel %vm457, %v1117, %v1119
        %1121 = vrot.lane.b32.xlu0 %v1118, 123
        %v1122 = vpop.permute.xlu0 %1121
        %1123 = vrot.lane.b32.xlu0 %v1120, 123
        %v1124 = vpop.permute.xlu0 %1123
        %v1127 = vadd.f32 %v1107, %v1122
        %v1128 = vadd.f32 %v1108, %v1124
        %v1129 = vstv %s323
        %v1130 = vmul.f32 %v1129, %v374
        %v1131 = vmul.f32 %v1129, %v375
        %v1132 = vmul.f32 %v1129, %v376
        %v1136 = vrot.slane %v1130, 6
        %v1137 = vrot.slane %v1131, 6
        %v1138 = vsel %vm474, %v1136, %v1137
        %v1139 = vrot.slane %v1132, 6
        %v1140 = vsel %vm474, %v1137, %v1139
        %1141 = vrot.lane.b32.xlu0 %v1138, 123
        %v1142 = vpop.permute.xlu0 %1141
        %1143 = vrot.lane.b32.xlu0 %v1140, 123
        %v1144 = vpop.permute.xlu0 %1143
        %v1147 = vadd.f32 %v1127, %v1142
        %v1148 = vadd.f32 %v1128, %v1144
        %v1149 = vstv %s282
        %v1150 = vmul.f32 %v1149, %v374
        %v1151 = vmul.f32 %v1149, %v375
        %1154 = vrot.lane.b32.xlu0 %v1150, 122
        %v1155 = vpop.permute.xlu0 %1154
        %1156 = vrot.lane.b32.xlu0 %v1151, 122
        %v1157 = vpop.permute.xlu0 %1156
        %v1160 = vadd.f32 %v1147, %v1155
        %v1161 = vadd.f32 %v1148, %v1157
        %v1162 = vstv %s289
        %v1163 = vmul.f32 %v1162, %v374
        %v1164 = vmul.f32 %v1162, %v375
        %v1165 = vmul.f32 %v1162, %v376
        %v1169 = vrot.slane %v1163, 1
        %v1170 = vrot.slane %v1164, 1
        %v1171 = vsel %vm389, %v1169, %v1170
        %v1172 = vrot.slane %v1165, 1
        %v1173 = vsel %vm389, %v1170, %v1172
        %1174 = vrot.lane.b32.xlu0 %v1171, 122
        %v1175 = vpop.permute.xlu0 %1174
        %1176 = vrot.lane.b32.xlu0 %v1173, 122
        %v1177 = vpop.permute.xlu0 %1176
        %v1180 = vadd.f32 %v1160, %v1175
        %v1181 = vadd.f32 %v1161, %v1177
        %v1182 = vstv %s296
        %v1183 = vmul.f32 %v1182, %v374
        %v1184 = vmul.f32 %v1182, %v375
        %v1185 = vmul.f32 %v1182, %v376
        %v1189 = vrot.slane %v1183, 2
        %v1190 = vrot.slane %v1184, 2
        %v1191 = vsel %vm406, %v1189, %v1190
        %v1192 = vrot.slane %v1185, 2
        %v1193 = vsel %vm406, %v1190, %v1192
        %1194 = vrot.lane.b32.xlu0 %v1191, 122
        %v1195 = vpop.permute.xlu0 %1194
        %1196 = vrot.lane.b32.xlu0 %v1193, 122
        %v1197 = vpop.permute.xlu0 %1196
        %v1200 = vadd.f32 %v1180, %v1195
        %v1201 = vadd.f32 %v1181, %v1197
        %v1202 = vstv %s303
        %v1203 = vmul.f32 %v1202, %v374
        %v1204 = vmul.f32 %v1202, %v375
        %v1205 = vmul.f32 %v1202, %v376
        %v1209 = vrot.slane %v1203, 3
        %v1210 = vrot.slane %v1204, 3
        %v1211 = vsel %vm423, %v1209, %v1210
        %v1212 = vrot.slane %v1205, 3
        %v1213 = vsel %vm423, %v1210, %v1212
        %1214 = vrot.lane.b32.xlu0 %v1211, 122
        %v1215 = vpop.permute.xlu0 %1214
        %1216 = vrot.lane.b32.xlu0 %v1213, 122
        %v1217 = vpop.permute.xlu0 %1216
        %v1220 = vadd.f32 %v1200, %v1215
        %v1221 = vadd.f32 %v1201, %v1217
        %v1222 = vstv %s310
        %v1223 = vmul.f32 %v1222, %v374
        %v1224 = vmul.f32 %v1222, %v375
        %v1225 = vmul.f32 %v1222, %v376
        %v1229 = vrot.slane %v1223, 4
        %v1230 = vrot.slane %v1224, 4
        %v1231 = vsel %vm440, %v1229, %v1230
        %v1232 = vrot.slane %v1225, 4
        %v1233 = vsel %vm440, %v1230, %v1232
        %1234 = vrot.lane.b32.xlu0 %v1231, 122
        %v1235 = vpop.permute.xlu0 %1234
        %1236 = vrot.lane.b32.xlu0 %v1233, 122
        %v1237 = vpop.permute.xlu0 %1236
        %v1240 = vadd.f32 %v1220, %v1235
        %v1241 = vadd.f32 %v1221, %v1237
        %v1242 = vstv %s317
        %v1243 = vmul.f32 %v1242, %v374
        %v1244 = vmul.f32 %v1242, %v375
        %v1245 = vmul.f32 %v1242, %v376
        %v1249 = vrot.slane %v1243, 5
        %v1250 = vrot.slane %v1244, 5
        %v1251 = vsel %vm457, %v1249, %v1250
        %v1252 = vrot.slane %v1245, 5
        %v1253 = vsel %vm457, %v1250, %v1252
        %1254 = vrot.lane.b32.xlu0 %v1251, 122
        %v1255 = vpop.permute.xlu0 %1254
        %1256 = vrot.lane.b32.xlu0 %v1253, 122
        %v1257 = vpop.permute.xlu0 %1256
        %v1260 = vadd.f32 %v1240, %v1255
        %v1261 = vadd.f32 %v1241, %v1257
        %v1262 = vstv %s324
        %v1263 = vmul.f32 %v1262, %v374
        %v1264 = vmul.f32 %v1262, %v375
        %v1265 = vmul.f32 %v1262, %v376
        %v1269 = vrot.slane %v1263, 6
        %v1270 = vrot.slane %v1264, 6
        %v1271 = vsel %vm474, %v1269, %v1270
        %v1272 = vrot.slane %v1265, 6
        %v1273 = vsel %vm474, %v1270, %v1272
        %1274 = vrot.lane.b32.xlu0 %v1271, 122
        %v1275 = vpop.permute.xlu0 %1274
        %1276 = vrot.lane.b32.xlu0 %v1273, 122
        %v1277 = vpop.permute.xlu0 %1276
        %v1280 = vadd.f32 %v1260, %v1275
        %v1281 = vadd.f32 %v1261, %v1277
        %v1282 = vld [vmem:[%s273] sm:$0xff]
        %v1283 = vld [vmem:[%s273 + $0x8] sm:$0xff]
        %v1284 = vld [vmem:[%s273 + $0x10] sm:$0xff]
        %v1285 = vstv %s325
        %v1286 = vmul.f32 %v1285, %v1282
        %v1287 = vmul.f32 %v1285, %v1283
        %v1288 = vadd.f32 %v1280, %v1286
        %v1289 = vadd.f32 %v1281, %v1287
        %v1290 = vstv %s332
        %v1291 = vmul.f32 %v1290, %v1282
        %v1292 = vmul.f32 %v1290, %v1283
        %v1293 = vmul.f32 %v1290, %v1284
        %v1297 = vrot.slane %v1291, 1
        %v1298 = vrot.slane %v1292, 1
        %v1299 = vsel %vm389, %v1297, %v1298
        %v1300 = vrot.slane %v1293, 1
        %v1301 = vsel %vm389, %v1298, %v1300
        %v1304 = vadd.f32 %v1288, %v1299
        %v1305 = vadd.f32 %v1289, %v1301
        %v1306 = vstv %s339
        %v1307 = vmul.f32 %v1306, %v1282
        %v1308 = vmul.f32 %v1306, %v1283
        %v1309 = vmul.f32 %v1306, %v1284
        %v1313 = vrot.slane %v1307, 2
        %v1314 = vrot.slane %v1308, 2
        %v1315 = vsel %vm406, %v1313, %v1314
        %v1316 = vrot.slane %v1309, 2
        %v1317 = vsel %vm406, %v1314, %v1316
        %v1320 = vadd.f32 %v1304, %v1315
        %v1321 = vadd.f32 %v1305, %v1317
        %v1322 = vstv %s346
        %v1323 = vmul.f32 %v1322, %v1282
        %v1324 = vmul.f32 %v1322, %v1283
        %v1325 = vmul.f32 %v1322, %v1284
        %v1329 = vrot.slane %v1323, 3
        %v1330 = vrot.slane %v1324, 3
        %v1331 = vsel %vm423, %v1329, %v1330
        %v1332 = vrot.slane %v1325, 3
        %v1333 = vsel %vm423, %v1330, %v1332
        %v1336 = vadd.f32 %v1320, %v1331
        %v1337 = vadd.f32 %v1321, %v1333
        %v1338 = vstv %s353
        %v1339 = vmul.f32 %v1338, %v1282
        %v1340 = vmul.f32 %v1338, %v1283
        %v1341 = vmul.f32 %v1338, %v1284
        %v1345 = vrot.slane %v1339, 4
        %v1346 = vrot.slane %v1340, 4
        %v1347 = vsel %vm440, %v1345, %v1346
        %v1348 = vrot.slane %v1341, 4
        %v1349 = vsel %vm440, %v1346, %v1348
        %v1352 = vadd.f32 %v1336, %v1347
        %v1353 = vadd.f32 %v1337, %v1349
        %v1354 = vstv %s360
        %v1355 = vmul.f32 %v1354, %v1282
        %v1356 = vmul.f32 %v1354, %v1283
        %v1357 = vmul.f32 %v1354, %v1284
        %v1361 = vrot.slane %v1355, 5
        %v1362 = vrot.slane %v1356, 5
        %v1363 = vsel %vm457, %v1361, %v1362
        %v1364 = vrot.slane %v1357, 5
        %v1365 = vsel %vm457, %v1362, %v1364
        %v1368 = vadd.f32 %v1352, %v1363
        %v1369 = vadd.f32 %v1353, %v1365
        %v1370 = vstv %s367
        %v1371 = vmul.f32 %v1370, %v1282
        %v1372 = vmul.f32 %v1370, %v1283
        %v1373 = vmul.f32 %v1370, %v1284
        %v1377 = vrot.slane %v1371, 6
        %v1378 = vrot.slane %v1372, 6
        %v1379 = vsel %vm474, %v1377, %v1378
        %v1380 = vrot.slane %v1373, 6
        %v1381 = vsel %vm474, %v1378, %v1380
        %v1384 = vadd.f32 %v1368, %v1379
        %v1385 = vadd.f32 %v1369, %v1381
        %v1386 = vstv %s326
        %v1387 = vmul.f32 %v1386, %v1282
        %v1388 = vmul.f32 %v1386, %v1283
        %1391 = vrot.lane.b32.xlu0 %v1387, 127
        %v1392 = vpop.permute.xlu0 %1391
        %1393 = vrot.lane.b32.xlu0 %v1388, 127
        %v1394 = vpop.permute.xlu0 %1393
        %v1397 = vadd.f32 %v1384, %v1392
        %v1398 = vadd.f32 %v1385, %v1394
        %v1399 = vstv %s333
        %v1400 = vmul.f32 %v1399, %v1282
        %v1401 = vmul.f32 %v1399, %v1283
        %v1402 = vmul.f32 %v1399, %v1284
        %v1406 = vrot.slane %v1400, 1
        %v1407 = vrot.slane %v1401, 1
        %v1408 = vsel %vm389, %v1406, %v1407
        %v1409 = vrot.slane %v1402, 1
        %v1410 = vsel %vm389, %v1407, %v1409
        %1411 = vrot.lane.b32.xlu0 %v1408, 127
        %v1412 = vpop.permute.xlu0 %1411
        %1413 = vrot.lane.b32.xlu0 %v1410, 127
        %v1414 = vpop.permute.xlu0 %1413
        %v1417 = vadd.f32 %v1397, %v1412
        %v1418 = vadd.f32 %v1398, %v1414
        %v1419 = vstv %s340
        %v1420 = vmul.f32 %v1419, %v1282
        %v1421 = vmul.f32 %v1419, %v1283
        %v1422 = vmul.f32 %v1419, %v1284
        %v1426 = vrot.slane %v1420, 2
        %v1427 = vrot.slane %v1421, 2
        %v1428 = vsel %vm406, %v1426, %v1427
        %v1429 = vrot.slane %v1422, 2
        %v1430 = vsel %vm406, %v1427, %v1429
        %1431 = vrot.lane.b32.xlu0 %v1428, 127
        %v1432 = vpop.permute.xlu0 %1431
        %1433 = vrot.lane.b32.xlu0 %v1430, 127
        %v1434 = vpop.permute.xlu0 %1433
        %v1437 = vadd.f32 %v1417, %v1432
        %v1438 = vadd.f32 %v1418, %v1434
        %v1439 = vstv %s347
        %v1440 = vmul.f32 %v1439, %v1282
        %v1441 = vmul.f32 %v1439, %v1283
        %v1442 = vmul.f32 %v1439, %v1284
        %v1446 = vrot.slane %v1440, 3
        %v1447 = vrot.slane %v1441, 3
        %v1448 = vsel %vm423, %v1446, %v1447
        %v1449 = vrot.slane %v1442, 3
        %v1450 = vsel %vm423, %v1447, %v1449
        %1451 = vrot.lane.b32.xlu0 %v1448, 127
        %v1452 = vpop.permute.xlu0 %1451
        %1453 = vrot.lane.b32.xlu0 %v1450, 127
        %v1454 = vpop.permute.xlu0 %1453
        %v1457 = vadd.f32 %v1437, %v1452
        %v1458 = vadd.f32 %v1438, %v1454
        %v1459 = vstv %s354
        %v1460 = vmul.f32 %v1459, %v1282
        %v1461 = vmul.f32 %v1459, %v1283
        %v1462 = vmul.f32 %v1459, %v1284
        %v1466 = vrot.slane %v1460, 4
        %v1467 = vrot.slane %v1461, 4
        %v1468 = vsel %vm440, %v1466, %v1467
        %v1469 = vrot.slane %v1462, 4
        %v1470 = vsel %vm440, %v1467, %v1469
        %1471 = vrot.lane.b32.xlu0 %v1468, 127
        %v1472 = vpop.permute.xlu0 %1471
        %1473 = vrot.lane.b32.xlu0 %v1470, 127
        %v1474 = vpop.permute.xlu0 %1473
        %v1477 = vadd.f32 %v1457, %v1472
        %v1478 = vadd.f32 %v1458, %v1474
        %v1479 = vstv %s361
        %v1480 = vmul.f32 %v1479, %v1282
        %v1481 = vmul.f32 %v1479, %v1283
        %v1482 = vmul.f32 %v1479, %v1284
        %v1486 = vrot.slane %v1480, 5
        %v1487 = vrot.slane %v1481, 5
        %v1488 = vsel %vm457, %v1486, %v1487
        %v1489 = vrot.slane %v1482, 5
        %v1490 = vsel %vm457, %v1487, %v1489
        %1491 = vrot.lane.b32.xlu0 %v1488, 127
        %v1492 = vpop.permute.xlu0 %1491
        %1493 = vrot.lane.b32.xlu0 %v1490, 127
        %v1494 = vpop.permute.xlu0 %1493
        %v1497 = vadd.f32 %v1477, %v1492
        %v1498 = vadd.f32 %v1478, %v1494
        %v1499 = vstv %s368
        %v1500 = vmul.f32 %v1499, %v1282
        %v1501 = vmul.f32 %v1499, %v1283
        %v1502 = vmul.f32 %v1499, %v1284
        %v1506 = vrot.slane %v1500, 6
        %v1507 = vrot.slane %v1501, 6
        %v1508 = vsel %vm474, %v1506, %v1507
        %v1509 = vrot.slane %v1502, 6
        %v1510 = vsel %vm474, %v1507, %v1509
        %1511 = vrot.lane.b32.xlu0 %v1508, 127
        %v1512 = vpop.permute.xlu0 %1511
        %1513 = vrot.lane.b32.xlu0 %v1510, 127
        %v1514 = vpop.permute.xlu0 %1513
        %v1517 = vadd.f32 %v1497, %v1512
        %v1518 = vadd.f32 %v1498, %v1514
        %v1519 = vstv %s327
        %v1520 = vmul.f32 %v1519, %v1282
        %v1521 = vmul.f32 %v1519, %v1283
        %1524 = vrot.lane.b32.xlu0 %v1520, 126
        %v1525 = vpop.permute.xlu0 %1524
        %1526 = vrot.lane.b32.xlu0 %v1521, 126
        %v1527 = vpop.permute.xlu0 %1526
        %v1530 = vadd.f32 %v1517, %v1525
        %v1531 = vadd.f32 %v1518, %v1527
        %v1532 = vstv %s334
        %v1533 = vmul.f32 %v1532, %v1282
        %v1534 = vmul.f32 %v1532, %v1283
        %v1535 = vmul.f32 %v1532, %v1284
        %v1539 = vrot.slane %v1533, 1
        %v1540 = vrot.slane %v1534, 1
        %v1541 = vsel %vm389, %v1539, %v1540
        %v1542 = vrot.slane %v1535, 1
        %v1543 = vsel %vm389, %v1540, %v1542
        %1544 = vrot.lane.b32.xlu0 %v1541, 126
        %v1545 = vpop.permute.xlu0 %1544
        %1546 = vrot.lane.b32.xlu0 %v1543, 126
        %v1547 = vpop.permute.xlu0 %1546
        %v1550 = vadd.f32 %v1530, %v1545
        %v1551 = vadd.f32 %v1531, %v1547
        %v1552 = vstv %s341
        %v1553 = vmul.f32 %v1552, %v1282
        %v1554 = vmul.f32 %v1552, %v1283
        %v1555 = vmul.f32 %v1552, %v1284
        %v1559 = vrot.slane %v1553, 2
        %v1560 = vrot.slane %v1554, 2
        %v1561 = vsel %vm406, %v1559, %v1560
        %v1562 = vrot.slane %v1555, 2
        %v1563 = vsel %vm406, %v1560, %v1562
        %1564 = vrot.lane.b32.xlu0 %v1561, 126
        %v1565 = vpop.permute.xlu0 %1564
        %1566 = vrot.lane.b32.xlu0 %v1563, 126
        %v1567 = vpop.permute.xlu0 %1566
        %v1570 = vadd.f32 %v1550, %v1565
        %v1571 = vadd.f32 %v1551, %v1567
        %v1572 = vstv %s348
        %v1573 = vmul.f32 %v1572, %v1282
        %v1574 = vmul.f32 %v1572, %v1283
        %v1575 = vmul.f32 %v1572, %v1284
        %v1579 = vrot.slane %v1573, 3
        %v1580 = vrot.slane %v1574, 3
        %v1581 = vsel %vm423, %v1579, %v1580
        %v1582 = vrot.slane %v1575, 3
        %v1583 = vsel %vm423, %v1580, %v1582
        %1584 = vrot.lane.b32.xlu0 %v1581, 126
        %v1585 = vpop.permute.xlu0 %1584
        %1586 = vrot.lane.b32.xlu0 %v1583, 126
        %v1587 = vpop.permute.xlu0 %1586
        %v1590 = vadd.f32 %v1570, %v1585
        %v1591 = vadd.f32 %v1571, %v1587
        %v1592 = vstv %s355
        %v1593 = vmul.f32 %v1592, %v1282
        %v1594 = vmul.f32 %v1592, %v1283
        %v1595 = vmul.f32 %v1592, %v1284
        %v1599 = vrot.slane %v1593, 4
        %v1600 = vrot.slane %v1594, 4
        %v1601 = vsel %vm440, %v1599, %v1600
        %v1602 = vrot.slane %v1595, 4
        %v1603 = vsel %vm440, %v1600, %v1602
        %1604 = vrot.lane.b32.xlu0 %v1601, 126
        %v1605 = vpop.permute.xlu0 %1604
        %1606 = vrot.lane.b32.xlu0 %v1603, 126
        %v1607 = vpop.permute.xlu0 %1606
        %v1610 = vadd.f32 %v1590, %v1605
        %v1611 = vadd.f32 %v1591, %v1607
        %v1612 = vstv %s362
        %v1613 = vmul.f32 %v1612, %v1282
        %v1614 = vmul.f32 %v1612, %v1283
        %v1615 = vmul.f32 %v1612, %v1284
        %v1619 = vrot.slane %v1613, 5
        %v1620 = vrot.slane %v1614, 5
        %v1621 = vsel %vm457, %v1619, %v1620
        %v1622 = vrot.slane %v1615, 5
        %v1623 = vsel %vm457, %v1620, %v1622
        %1624 = vrot.lane.b32.xlu0 %v1621, 126
        %v1625 = vpop.permute.xlu0 %1624
        %1626 = vrot.lane.b32.xlu0 %v1623, 126
        %v1627 = vpop.permute.xlu0 %1626
        %v1630 = vadd.f32 %v1610, %v1625
        %v1631 = vadd.f32 %v1611, %v1627
        %v1632 = vstv %s369
        %v1633 = vmul.f32 %v1632, %v1282
        %v1634 = vmul.f32 %v1632, %v1283
        %v1635 = vmul.f32 %v1632, %v1284
        %v1639 = vrot.slane %v1633, 6
        %v1640 = vrot.slane %v1634, 6
        %v1641 = vsel %vm474, %v1639, %v1640
        %v1642 = vrot.slane %v1635, 6
        %v1643 = vsel %vm474, %v1640, %v1642
        %1644 = vrot.lane.b32.xlu0 %v1641, 126
        %v1645 = vpop.permute.xlu0 %1644
        %1646 = vrot.lane.b32.xlu0 %v1643, 126
        %v1647 = vpop.permute.xlu0 %1646
        %v1650 = vadd.f32 %v1630, %v1645
        %v1651 = vadd.f32 %v1631, %v1647
        %v1652 = vstv %s328
        %v1653 = vmul.f32 %v1652, %v1282
        %v1654 = vmul.f32 %v1652, %v1283
        %1657 = vrot.lane.b32.xlu0 %v1653, 125
        %v1658 = vpop.permute.xlu0 %1657
        %1659 = vrot.lane.b32.xlu0 %v1654, 125
        %v1660 = vpop.permute.xlu0 %1659
        %v1663 = vadd.f32 %v1650, %v1658
        %v1664 = vadd.f32 %v1651, %v1660
        %v1665 = vstv %s335
        %v1666 = vmul.f32 %v1665, %v1282
        %v1667 = vmul.f32 %v1665, %v1283
        %v1668 = vmul.f32 %v1665, %v1284
        %v1672 = vrot.slane %v1666, 1
        %v1673 = vrot.slane %v1667, 1
        %v1674 = vsel %vm389, %v1672, %v1673
        %v1675 = vrot.slane %v1668, 1
        %v1676 = vsel %vm389, %v1673, %v1675
        %1677 = vrot.lane.b32.xlu0 %v1674, 125
        %v1678 = vpop.permute.xlu0 %1677
        %1679 = vrot.lane.b32.xlu0 %v1676, 125
        %v1680 = vpop.permute.xlu0 %1679
        %v1683 = vadd.f32 %v1663, %v1678
        %v1684 = vadd.f32 %v1664, %v1680
        %v1685 = vstv %s342
        %v1686 = vmul.f32 %v1685, %v1282
        %v1687 = vmul.f32 %v1685, %v1283
        %v1688 = vmul.f32 %v1685, %v1284
        %v1692 = vrot.slane %v1686, 2
        %v1693 = vrot.slane %v1687, 2
        %v1694 = vsel %vm406, %v1692, %v1693
        %v1695 = vrot.slane %v1688, 2
        %v1696 = vsel %vm406, %v1693, %v1695
        %1697 = vrot.lane.b32.xlu0 %v1694, 125
        %v1698 = vpop.permute.xlu0 %1697
        %1699 = vrot.lane.b32.xlu0 %v1696, 125
        %v1700 = vpop.permute.xlu0 %1699
        %v1703 = vadd.f32 %v1683, %v1698
        %v1704 = vadd.f32 %v1684, %v1700
        %v1705 = vstv %s349
        %v1706 = vmul.f32 %v1705, %v1282
        %v1707 = vmul.f32 %v1705, %v1283
        %v1708 = vmul.f32 %v1705, %v1284
        %v1712 = vrot.slane %v1706, 3
        %v1713 = vrot.slane %v1707, 3
        %v1714 = vsel %vm423, %v1712, %v1713
        %v1715 = vrot.slane %v1708, 3
        %v1716 = vsel %vm423, %v1713, %v1715
        %1717 = vrot.lane.b32.xlu0 %v1714, 125
        %v1718 = vpop.permute.xlu0 %1717
        %1719 = vrot.lane.b32.xlu0 %v1716, 125
        %v1720 = vpop.permute.xlu0 %1719
        %v1723 = vadd.f32 %v1703, %v1718
        %v1724 = vadd.f32 %v1704, %v1720
        %v1725 = vstv %s356
        %v1726 = vmul.f32 %v1725, %v1282
        %v1727 = vmul.f32 %v1725, %v1283
        %v1728 = vmul.f32 %v1725, %v1284
        %v1732 = vrot.slane %v1726, 4
        %v1733 = vrot.slane %v1727, 4
        %v1734 = vsel %vm440, %v1732, %v1733
        %v1735 = vrot.slane %v1728, 4
        %v1736 = vsel %vm440, %v1733, %v1735
        %1737 = vrot.lane.b32.xlu0 %v1734, 125
        %v1738 = vpop.permute.xlu0 %1737
        %1739 = vrot.lane.b32.xlu0 %v1736, 125
        %v1740 = vpop.permute.xlu0 %1739
        %v1743 = vadd.f32 %v1723, %v1738
        %v1744 = vadd.f32 %v1724, %v1740
        %v1745 = vstv %s363
        %v1746 = vmul.f32 %v1745, %v1282
        %v1747 = vmul.f32 %v1745, %v1283
        %v1748 = vmul.f32 %v1745, %v1284
        %v1752 = vrot.slane %v1746, 5
        %v1753 = vrot.slane %v1747, 5
        %v1754 = vsel %vm457, %v1752, %v1753
        %v1755 = vrot.slane %v1748, 5
        %v1756 = vsel %vm457, %v1753, %v1755
        %1757 = vrot.lane.b32.xlu0 %v1754, 125
        %v1758 = vpop.permute.xlu0 %1757
        %1759 = vrot.lane.b32.xlu0 %v1756, 125
        %v1760 = vpop.permute.xlu0 %1759
        %v1763 = vadd.f32 %v1743, %v1758
        %v1764 = vadd.f32 %v1744, %v1760
        %v1765 = vstv %s370
        %v1766 = vmul.f32 %v1765, %v1282
        %v1767 = vmul.f32 %v1765, %v1283
        %v1768 = vmul.f32 %v1765, %v1284
        %v1772 = vrot.slane %v1766, 6
        %v1773 = vrot.slane %v1767, 6
        %v1774 = vsel %vm474, %v1772, %v1773
        %v1775 = vrot.slane %v1768, 6
        %v1776 = vsel %vm474, %v1773, %v1775
        %1777 = vrot.lane.b32.xlu0 %v1774, 125
        %v1778 = vpop.permute.xlu0 %1777
        %1779 = vrot.lane.b32.xlu0 %v1776, 125
        %v1780 = vpop.permute.xlu0 %1779
        %v1783 = vadd.f32 %v1763, %v1778
        %v1784 = vadd.f32 %v1764, %v1780
        %v1785 = vstv %s329
        %v1786 = vmul.f32 %v1785, %v1282
        %v1787 = vmul.f32 %v1785, %v1283
        %1790 = vrot.lane.b32.xlu0 %v1786, 124
        %v1791 = vpop.permute.xlu0 %1790
        %1792 = vrot.lane.b32.xlu0 %v1787, 124
        %v1793 = vpop.permute.xlu0 %1792
        %v1796 = vadd.f32 %v1783, %v1791
        %v1797 = vadd.f32 %v1784, %v1793
        %v1798 = vstv %s336
        %v1799 = vmul.f32 %v1798, %v1282
        %v1800 = vmul.f32 %v1798, %v1283
        %v1801 = vmul.f32 %v1798, %v1284
        %v1805 = vrot.slane %v1799, 1
        %v1806 = vrot.slane %v1800, 1
        %v1807 = vsel %vm389, %v1805, %v1806
        %v1808 = vrot.slane %v1801, 1
        %v1809 = vsel %vm389, %v1806, %v1808
        %1810 = vrot.lane.b32.xlu0 %v1807, 124
        %v1811 = vpop.permute.xlu0 %1810
        %1812 = vrot.lane.b32.xlu0 %v1809, 124
        %v1813 = vpop.permute.xlu0 %1812
        %v1816 = vadd.f32 %v1796, %v1811
        %v1817 = vadd.f32 %v1797, %v1813
        %v1818 = vstv %s343
        %v1819 = vmul.f32 %v1818, %v1282
        %v1820 = vmul.f32 %v1818, %v1283
        %v1821 = vmul.f32 %v1818, %v1284
        %v1825 = vrot.slane %v1819, 2
        %v1826 = vrot.slane %v1820, 2
        %v1827 = vsel %vm406, %v1825, %v1826
        %v1828 = vrot.slane %v1821, 2
        %v1829 = vsel %vm406, %v1826, %v1828
        %1830 = vrot.lane.b32.xlu0 %v1827, 124
        %v1831 = vpop.permute.xlu0 %1830
        %1832 = vrot.lane.b32.xlu0 %v1829, 124
        %v1833 = vpop.permute.xlu0 %1832
        %v1836 = vadd.f32 %v1816, %v1831
        %v1837 = vadd.f32 %v1817, %v1833
        %v1838 = vstv %s350
        %v1839 = vmul.f32 %v1838, %v1282
        %v1840 = vmul.f32 %v1838, %v1283
        %v1841 = vmul.f32 %v1838, %v1284
        %v1845 = vrot.slane %v1839, 3
        %v1846 = vrot.slane %v1840, 3
        %v1847 = vsel %vm423, %v1845, %v1846
        %v1848 = vrot.slane %v1841, 3
        %v1849 = vsel %vm423, %v1846, %v1848
        %1850 = vrot.lane.b32.xlu0 %v1847, 124
        %v1851 = vpop.permute.xlu0 %1850
        %1852 = vrot.lane.b32.xlu0 %v1849, 124
        %v1853 = vpop.permute.xlu0 %1852
        %v1856 = vadd.f32 %v1836, %v1851
        %v1857 = vadd.f32 %v1837, %v1853
        %v1858 = vstv %s357
        %v1859 = vmul.f32 %v1858, %v1282
        %v1860 = vmul.f32 %v1858, %v1283
        %v1861 = vmul.f32 %v1858, %v1284
        %v1865 = vrot.slane %v1859, 4
        %v1866 = vrot.slane %v1860, 4
        %v1867 = vsel %vm440, %v1865, %v1866
        %v1868 = vrot.slane %v1861, 4
        %v1869 = vsel %vm440, %v1866, %v1868
        %1870 = vrot.lane.b32.xlu0 %v1867, 124
        %v1871 = vpop.permute.xlu0 %1870
        %1872 = vrot.lane.b32.xlu0 %v1869, 124
        %v1873 = vpop.permute.xlu0 %1872
        %v1876 = vadd.f32 %v1856, %v1871
        %v1877 = vadd.f32 %v1857, %v1873
        %v1878 = vstv %s364
        %v1879 = vmul.f32 %v1878, %v1282
        %v1880 = vmul.f32 %v1878, %v1283
        %v1881 = vmul.f32 %v1878, %v1284
        %v1885 = vrot.slane %v1879, 5
        %v1886 = vrot.slane %v1880, 5
        %v1887 = vsel %vm457, %v1885, %v1886
        %v1888 = vrot.slane %v1881, 5
        %v1889 = vsel %vm457, %v1886, %v1888
        %1890 = vrot.lane.b32.xlu0 %v1887, 124
        %v1891 = vpop.permute.xlu0 %1890
        %1892 = vrot.lane.b32.xlu0 %v1889, 124
        %v1893 = vpop.permute.xlu0 %1892
        %v1896 = vadd.f32 %v1876, %v1891
        %v1897 = vadd.f32 %v1877, %v1893
        %v1898 = vstv %s371
        %v1899 = vmul.f32 %v1898, %v1282
        %v1900 = vmul.f32 %v1898, %v1283
        %v1901 = vmul.f32 %v1898, %v1284
        %v1905 = vrot.slane %v1899, 6
        %v1906 = vrot.slane %v1900, 6
        %v1907 = vsel %vm474, %v1905, %v1906
        %v1908 = vrot.slane %v1901, 6
        %v1909 = vsel %vm474, %v1906, %v1908
        %1910 = vrot.lane.b32.xlu0 %v1907, 124
        %v1911 = vpop.permute.xlu0 %1910
        %1912 = vrot.lane.b32.xlu0 %v1909, 124
        %v1913 = vpop.permute.xlu0 %1912
        %v1916 = vadd.f32 %v1896, %v1911
        %v1917 = vadd.f32 %v1897, %v1913
        %v1918 = vstv %s330
        %v1919 = vmul.f32 %v1918, %v1282
        %v1920 = vmul.f32 %v1918, %v1283
        %1923 = vrot.lane.b32.xlu0 %v1919, 123
        %v1924 = vpop.permute.xlu0 %1923
        %1925 = vrot.lane.b32.xlu0 %v1920, 123
        %v1926 = vpop.permute.xlu0 %1925
        %v1929 = vadd.f32 %v1916, %v1924
        %v1930 = vadd.f32 %v1917, %v1926
        %v1931 = vstv %s337
        %v1932 = vmul.f32 %v1931, %v1282
        %v1933 = vmul.f32 %v1931, %v1283
        %v1934 = vmul.f32 %v1931, %v1284
        %v1938 = vrot.slane %v1932, 1
        %v1939 = vrot.slane %v1933, 1
        %v1940 = vsel %vm389, %v1938, %v1939
        %v1941 = vrot.slane %v1934, 1
        %v1942 = vsel %vm389, %v1939, %v1941
        %1943 = vrot.lane.b32.xlu0 %v1940, 123
        %v1944 = vpop.permute.xlu0 %1943
        %1945 = vrot.lane.b32.xlu0 %v1942, 123
        %v1946 = vpop.permute.xlu0 %1945
        %v1949 = vadd.f32 %v1929, %v1944
        %v1950 = vadd.f32 %v1930, %v1946
        %v1951 = vstv %s344
        %v1952 = vmul.f32 %v1951, %v1282
        %v1953 = vmul.f32 %v1951, %v1283
        %v1954 = vmul.f32 %v1951, %v1284
        %v1958 = vrot.slane %v1952, 2
        %v1959 = vrot.slane %v1953, 2
        %v1960 = vsel %vm406, %v1958, %v1959
        %v1961 = vrot.slane %v1954, 2
        %v1962 = vsel %vm406, %v1959, %v1961
        %1963 = vrot.lane.b32.xlu0 %v1960, 123
        %v1964 = vpop.permute.xlu0 %1963
        %1965 = vrot.lane.b32.xlu0 %v1962, 123
        %v1966 = vpop.permute.xlu0 %1965
        %v1969 = vadd.f32 %v1949, %v1964
        %v1970 = vadd.f32 %v1950, %v1966
        %v1971 = vstv %s351
        %v1972 = vmul.f32 %v1971, %v1282
        %v1973 = vmul.f32 %v1971, %v1283
        %v1974 = vmul.f32 %v1971, %v1284
        %v1978 = vrot.slane %v1972, 3
        %v1979 = vrot.slane %v1973, 3
        %v1980 = vsel %vm423, %v1978, %v1979
        %v1981 = vrot.slane %v1974, 3
        %v1982 = vsel %vm423, %v1979, %v1981
        %1983 = vrot.lane.b32.xlu0 %v1980, 123
        %v1984 = vpop.permute.xlu0 %1983
        %1985 = vrot.lane.b32.xlu0 %v1982, 123
        %v1986 = vpop.permute.xlu0 %1985
        %v1989 = vadd.f32 %v1969, %v1984
        %v1990 = vadd.f32 %v1970, %v1986
        %v1991 = vstv %s358
        %v1992 = vmul.f32 %v1991, %v1282
        %v1993 = vmul.f32 %v1991, %v1283
        %v1994 = vmul.f32 %v1991, %v1284
        %v1998 = vrot.slane %v1992, 4
        %v1999 = vrot.slane %v1993, 4
        %v2000 = vsel %vm440, %v1998, %v1999
        %v2001 = vrot.slane %v1994, 4
        %v2002 = vsel %vm440, %v1999, %v2001
        %2003 = vrot.lane.b32.xlu0 %v2000, 123
        %v2004 = vpop.permute.xlu0 %2003
        %2005 = vrot.lane.b32.xlu0 %v2002, 123
        %v2006 = vpop.permute.xlu0 %2005
        %v2009 = vadd.f32 %v1989, %v2004
        %v2010 = vadd.f32 %v1990, %v2006
        %v2011 = vstv %s365
        %v2012 = vmul.f32 %v2011, %v1282
        %v2013 = vmul.f32 %v2011, %v1283
        %v2014 = vmul.f32 %v2011, %v1284
        %v2018 = vrot.slane %v2012, 5
        %v2019 = vrot.slane %v2013, 5
        %v2020 = vsel %vm457, %v2018, %v2019
        %v2021 = vrot.slane %v2014, 5
        %v2022 = vsel %vm457, %v2019, %v2021
        %2023 = vrot.lane.b32.xlu0 %v2020, 123
        %v2024 = vpop.permute.xlu0 %2023
        %2025 = vrot.lane.b32.xlu0 %v2022, 123
        %v2026 = vpop.permute.xlu0 %2025
        %v2029 = vadd.f32 %v2009, %v2024
        %v2030 = vadd.f32 %v2010, %v2026
        %v2031 = vstv %s372
        %v2032 = vmul.f32 %v2031, %v1282
        %v2033 = vmul.f32 %v2031, %v1283
        %v2034 = vmul.f32 %v2031, %v1284
        %v2038 = vrot.slane %v2032, 6
        %v2039 = vrot.slane %v2033, 6
        %v2040 = vsel %vm474, %v2038, %v2039
        %v2041 = vrot.slane %v2034, 6
        %v2042 = vsel %vm474, %v2039, %v2041
        %2043 = vrot.lane.b32.xlu0 %v2040, 123
        %v2044 = vpop.permute.xlu0 %2043
        %2045 = vrot.lane.b32.xlu0 %v2042, 123
        %v2046 = vpop.permute.xlu0 %2045
        %v2049 = vadd.f32 %v2029, %v2044
        %v2050 = vadd.f32 %v2030, %v2046
        %v2051 = vstv %s331
        %v2052 = vmul.f32 %v2051, %v1282
        %v2053 = vmul.f32 %v2051, %v1283
        %2056 = vrot.lane.b32.xlu0 %v2052, 122
        %v2057 = vpop.permute.xlu0 %2056
        %2058 = vrot.lane.b32.xlu0 %v2053, 122
        %v2059 = vpop.permute.xlu0 %2058
        %v2062 = vadd.f32 %v2049, %v2057
        %v2063 = vadd.f32 %v2050, %v2059
        %v2064 = vstv %s338
        %v2065 = vmul.f32 %v2064, %v1282
        %v2066 = vmul.f32 %v2064, %v1283
        %v2067 = vmul.f32 %v2064, %v1284
        %v2071 = vrot.slane %v2065, 1
        %v2072 = vrot.slane %v2066, 1
        %v2073 = vsel %vm389, %v2071, %v2072
        %v2074 = vrot.slane %v2067, 1
        %v2075 = vsel %vm389, %v2072, %v2074
        %2076 = vrot.lane.b32.xlu0 %v2073, 122
        %v2077 = vpop.permute.xlu0 %2076
        %2078 = vrot.lane.b32.xlu0 %v2075, 122
        %v2079 = vpop.permute.xlu0 %2078
        %v2082 = vadd.f32 %v2062, %v2077
        %v2083 = vadd.f32 %v2063, %v2079
        %v2084 = vstv %s345
        %v2085 = vmul.f32 %v2084, %v1282
        %v2086 = vmul.f32 %v2084, %v1283
        %v2087 = vmul.f32 %v2084, %v1284
        %v2091 = vrot.slane %v2085, 2
        %v2092 = vrot.slane %v2086, 2
        %v2093 = vsel %vm406, %v2091, %v2092
        %v2094 = vrot.slane %v2087, 2
        %v2095 = vsel %vm406, %v2092, %v2094
        %2096 = vrot.lane.b32.xlu0 %v2093, 122
        %v2097 = vpop.permute.xlu0 %2096
        %2098 = vrot.lane.b32.xlu0 %v2095, 122
        %v2099 = vpop.permute.xlu0 %2098
        %v2102 = vadd.f32 %v2082, %v2097
        %v2103 = vadd.f32 %v2083, %v2099
        %v2104 = vstv %s352
        %v2105 = vmul.f32 %v2104, %v1282
        %v2106 = vmul.f32 %v2104, %v1283
        %v2107 = vmul.f32 %v2104, %v1284
        %v2111 = vrot.slane %v2105, 3
        %v2112 = vrot.slane %v2106, 3
        %v2113 = vsel %vm423, %v2111, %v2112
        %v2114 = vrot.slane %v2107, 3
        %v2115 = vsel %vm423, %v2112, %v2114
        %2116 = vrot.lane.b32.xlu0 %v2113, 122
        %v2117 = vpop.permute.xlu0 %2116
        %2118 = vrot.lane.b32.xlu0 %v2115, 122
        %v2119 = vpop.permute.xlu0 %2118
        %v2122 = vadd.f32 %v2102, %v2117
        %v2123 = vadd.f32 %v2103, %v2119
        %v2124 = vstv %s359
        %v2125 = vmul.f32 %v2124, %v1282
        %v2126 = vmul.f32 %v2124, %v1283
        %v2127 = vmul.f32 %v2124, %v1284
        %v2131 = vrot.slane %v2125, 4
        %v2132 = vrot.slane %v2126, 4
        %v2133 = vsel %vm440, %v2131, %v2132
        %v2134 = vrot.slane %v2127, 4
        %v2135 = vsel %vm440, %v2132, %v2134
        %2136 = vrot.lane.b32.xlu0 %v2133, 122
        %v2137 = vpop.permute.xlu0 %2136
        %2138 = vrot.lane.b32.xlu0 %v2135, 122
        %v2139 = vpop.permute.xlu0 %2138
        %v2142 = vadd.f32 %v2122, %v2137
        %v2143 = vadd.f32 %v2123, %v2139
        %v2144 = vstv %s366
        %v2145 = vmul.f32 %v2144, %v1282
        %v2146 = vmul.f32 %v2144, %v1283
        %v2147 = vmul.f32 %v2144, %v1284
        %v2151 = vrot.slane %v2145, 5
        %v2152 = vrot.slane %v2146, 5
        %v2153 = vsel %vm457, %v2151, %v2152
        %v2154 = vrot.slane %v2147, 5
        %v2155 = vsel %vm457, %v2152, %v2154
        %2156 = vrot.lane.b32.xlu0 %v2153, 122
        %v2157 = vpop.permute.xlu0 %2156
        %2158 = vrot.lane.b32.xlu0 %v2155, 122
        %v2159 = vpop.permute.xlu0 %2158
        %v2162 = vadd.f32 %v2142, %v2157
        %v2163 = vadd.f32 %v2143, %v2159
        %v2164 = vstv %s373
        %v2165 = vmul.f32 %v2164, %v1282
        %v2166 = vmul.f32 %v2164, %v1283
        %v2167 = vmul.f32 %v2164, %v1284
        %v2171 = vrot.slane %v2165, 6
        %v2172 = vrot.slane %v2166, 6
        %v2173 = vsel %vm474, %v2171, %v2172
        %v2174 = vrot.slane %v2167, 6
        %v2175 = vsel %vm474, %v2172, %v2174
        %2176 = vrot.lane.b32.xlu0 %v2173, 122
        %v2177 = vpop.permute.xlu0 %2176
        %2178 = vrot.lane.b32.xlu0 %v2175, 122
        %v2179 = vpop.permute.xlu0 %2178
        %v2182 = vadd.f32 %v2162, %v2177
        %v2183 = vadd.f32 %v2163, %v2179
        %s2184 = sld [smem:[#allocation8]]
        %v2185 = vstv %s2184
        %v2186 = vmul.f32 %v2182, %v2185
        %v2187 = vmul.f32 %v2183, %v2185
        %s2188 = sld [smem:[#allocation8 + $0x1]]
        %v2189 = vstv %s2188
        %v2190 = vadd.f32 %v2186, %v2189
        %v2191 = vadd.f32 %v2187, %v2189
        %v2192 = vxor.u32 %v2190, 2147483648
        %v2193 = vxor.u32 %v2191, 2147483648
        %v2194 = vmul.f32 %v2192, 1.442695
        %v2195 = vpow.pop %v2194
        %v2196 = vmul.f32 %v2193, 1.442695
        %v2197 = vpow.pop %v2196
        %v2198 = vadd.f32 %v2195, 1.0
        %v2199 = vadd.f32 %v2197, 1.0
        %v2200 = vrcp.pop %v2198
        %v2201 = vmul.f32 1.0, %v2200
        %v2202 = vrcp.pop %v2199
        %v2203 = vmul.f32 1.0, %v2202
        loop: start=0, step=1, limit=4
        $region52: #{tpu_custom_call.1} parent=31 // loop_pre_header
          _
        $region53: #{tpu_custom_call.1} parent=31 // loop_header
          %s2205 = sphi 0, %s2209
          %p2206 = scmp.ge.s32.totalorder %s2205, 4
        $region54: #{tpu_custom_call.1} parent=31 // loop_header_branch
          %2208 = sbr.rel (%p2206) target = $region58
        $region55: #{tpu_custom_call.1} parent=31 // loop_body
          %s2210 = smul.u32 %s2205, 16
          %s2211 = scalar_lea.vmem %s190, %s2210 [#allocation9]
          %v2212 = vld [vmem:[%s2211] sm:$0xff]
          %v2213 = vld [vmem:[%s2211 + $0x8] sm:$0xff]
          %v2214 = vmul.f32 %v2212, %v2201
          %v2215 = vmul.f32 %v2213, %v2203
          %s2216 = scalar_lea.vmem %s213, %s2210 [#allocation10]
          %vm2217 = vcmask 130048
          %2218 = vst.msk [vmem:[%s2216] sm:$0xff] %vm2217, %v2214
          %2219 = vst.msk [vmem:[%s2216 + $0x8] sm:$0xff] %vm2217, %v2215
        $region56: #{tpu_custom_call.1} parent=31 // loop_footer
          %s2209 = sadd.s32 1, %s2205
        $region57: #{tpu_custom_call.1} parent=31 // loop_footer_branch
          %2204 = sbr.rel target = $region53
        $region58: #{tpu_custom_call.1} parent=31 // loop_exit
          _
        %s2220 = sand.u32 %s98, 1
        %s2221 = scalar_lea.sflag [#allocation5], %s2220
        %s2222 = sand.u32 %s98, 1
        %s2223 = smul.addr %s2222, 64
        %s2224 = scalar_lea.vmem [#allocation10], %s2223
        // Predicated region
        $region59: #{tpu_custom_call.1} parent=31 // pred_check
          %p2225 = pneg %p108
        $region60: #{tpu_custom_call.1} parent=31 // pred_check_branch
          %2227 = sbr.rel (%p2225) target = $region62
        $region61: #{tpu_custom_call.1} parent=31 // pred_region
          %s2229 = ssub.s32 1024, 1024
          %2230 = vsyncadd %s2221, %s2229
          %s2231 = smul.addr %s22, 8
          %s2232 = smul.addr %s2231, 128
          %s2233 = scalar_lea.hbm %s3, %s2232
          %s2234 = sshll.u32 %s2224, 4
          %s2235 = int_to_ptr.vmem [resolvable:$true] %s2234
          %2240 = dma.vmem_to_hbm [thread:$0]  %s2235, 1024, %s2233, %s2221, 128, 128, 8
        $region62: #{tpu_custom_call.1} parent=31 // pred_fallthru
          _
      $region32: #{tpu_custom_call.1} parent=5 // pred_fallthru
        _
      %p2241 = scmp.le.s32.totalorder 2, %s17
      // Predicated region
      $region63: #{tpu_custom_call.1} parent=5 // pred_check
        %p2242 = pneg %p2241
      $region64: #{tpu_custom_call.1} parent=5 // pred_check_branch
        %2244 = sbr.rel (%p2242) target = $region66
      $region65: #{tpu_custom_call.1} parent=5 // pred_region
        %s2245 = ssub.s32 %s17, 2
        // Predicated region
        $region67: #{tpu_custom_call.1} parent=65 // pred_check
          %p2246 = pneg %p114
        $region68: #{tpu_custom_call.1} parent=65 // pred_check_branch
          %2248 = sbr.rel (%p2246) target = $region70
        $region69: #{tpu_custom_call.1} parent=65 // pred_region
          %s2249 = sand.u32 %s99, 1
          %s2250 = scalar_lea.sflag [#allocation5], %s2249
          %s2251 = sand.u32 %s99, 1
          %s2252 = smul.addr %s2251, 64
          %s2253 = scalar_lea.vmem [#allocation10], %s2252
          %2254 = dma.done %s2250, 1024
        $region70: #{tpu_custom_call.1} parent=65 // pred_fallthru
          _
      $region66: #{tpu_custom_call.1} parent=5 // pred_fallthru
        _
    $region6: #{tpu_custom_call.1} parent=1 // loop_footer
      %s21 = sadd.s32 1, %s17
    $region7: #{tpu_custom_call.1} parent=1 // loop_footer_branch
      %16 = sbr.rel target = $region3
    $region8: #{tpu_custom_call.1} parent=1 // loop_exit
      _
    %2255 = vsyncpa [#allocation4], 1
    %s2256 = scalar_lea.sflag [#allocation4], 1
    %2257 = vsyncpa %s2256, 1
    %2258 = vsyncpa [#allocation5], 1
    %s2259 = scalar_lea.sflag [#allocation5], 1
    %2260 = vsyncpa %s2259, 1
    %2261 = vsyncpa [#allocation6], 1
    %s2262 = scalar_lea.sflag [#allocation6], 1
    %2263 = vsyncpa %s2262, 1
    %2264 = vsyncpa [#allocation7], 1
    %s2265 = scalar_lea.sflag [#allocation7], 1
    %2266 = vsyncpa %s2265, 1

</llo_original>
